<compile_context>
chip_gen: v6e
topology: v6e:2x2x1
jax: 0.10.0
libtpu: 0.0.40
codegen_flags: <defaults>
</compile_context>

<pallas_src>
import functools

import jax
import jax.numpy as jnp
from jax.experimental import pallas as pl
from jax.experimental.pallas import tpu as pltpu


# ----------------------------- Pallas kernel -------------------------------

def _gcn_conv_kernel(a_ref, x_ref, w_ref, bias_ref, o_ref, acc_ref, *,
                     apply_relu):
    """One (tm, tn) output tile of  A_hat @ (X @ W) + bias  (+ optional ReLU).

    Grid is (M/tm, Ncols/tn, Knodes/tk); axis 2 is the node contraction.  The
    (tk, tn) X@W slab is recomputed per step (fused feature transform); the
    f32 accumulator lives in VMEM scratch and is written back once at k==last.
    """
    k = pl.program_id(2)

    # Fused feature transform for this K-tile of nodes: (tk, F) @ (F, tn).
    xw = jnp.dot(x_ref[...], w_ref[...], preferred_element_type=jnp.float32)
    xw = xw.astype(a_ref.dtype)

    prod = jnp.dot(a_ref[...], xw, preferred_element_type=jnp.float32)

    @pl.when(k == 0)
    def _():
        acc_ref[...] = prod            # init with first product (no zero-fill)

    @pl.when(k > 0)
    def _():
        acc_ref[...] += prod

    @pl.when(k == pl.num_programs(2) - 1)
    def _():
        h = acc_ref[...] + bias_ref[...].astype(jnp.float32)
        if apply_relu:
            h = jnp.maximum(h, 0.0)
        o_ref[...] = h.astype(o_ref.dtype)


def _pick_tile(dim, candidates, min_tiles=1):
    """Largest candidate tile dividing `dim` with at least `min_tiles` tiles."""
    for t in candidates:
        if t <= dim and dim % t == 0 and dim // t >= min_tiles:
            return t
    for t in candidates:
        if t <= dim and dim % t == 0:
            return t
    return dim


def gcn_conv(a_hat, x, w, bias, *, apply_relu, out_dtype):
    """out = A_hat @ (x @ w) + bias (+ReLU), single fused Pallas call.

    Shapes (all pre-padded): a_hat (M, Kn), x (Kn, F), w (F, N), bias (1, N).
    M, Kn multiples of 128; F, N multiples of 128.
    """
    m, kn = a_hat.shape
    kn2, f = x.shape
    f2, n = w.shape
    assert kn == kn2 and f == f2 and bias.shape == (1, n), \
        (a_hat.shape, x.shape, w.shape, bias.shape)
    assert f % 128 == 0 and n % 128 == 0 and m % 128 == 0 and kn % 128 == 0

    tn = 128                                             # lane-dense output tile
    tm = _pick_tile(m, (512, 384, 256, 128), min_tiles=2)   # >=2 row tiles (v7x 2 TC)
    tk = _pick_tile(kn, (1024, 512, 256, 128), min_tiles=1)  # long DMA bursts
    out_dtype = jnp.dtype(out_dtype)

    flops = 2 * m * n * kn + 2 * kn * f * n * (m // tm)      # agg + XW recompute
    bytes_accessed = (m * kn * a_hat.dtype.itemsize
                      + (m // tm) * kn * f * x.dtype.itemsize
                      + f * n * w.dtype.itemsize
                      + n * bias.dtype.itemsize
                      + m * n * out_dtype.itemsize)
    cost = pl.CostEstimate(flops=flops, transcendentals=0,
                           bytes_accessed=bytes_accessed)

    kernel = functools.partial(_gcn_conv_kernel, apply_relu=apply_relu)
    # NOTE: pipeline_mode=pl.Buffered(3) on the A-tile spec is a further tuning
    # knob if DMA is exposed; default double-buffering is used here.
    return pl.pallas_call(
        kernel,
        out_shape=jax.ShapeDtypeStruct((m, n), out_dtype),
        grid_spec=pltpu.PrefetchScalarGridSpec(
            num_scalar_prefetch=0,
            grid=(m // tm, n // tn, kn // tk),
            in_specs=[
                pl.BlockSpec((tm, tk), lambda i, j, l: (i, l)),  # A_hat tile
                pl.BlockSpec((tk, f), lambda i, j, l: (l, 0)),   # X node-panel
                pl.BlockSpec((f, tn), lambda i, j, l: (0, j)),   # W (resident)
                pl.BlockSpec((1, tn), lambda i, j, l: (0, j)),   # bias (f32)
            ],
            out_specs=pl.BlockSpec((tm, tn), lambda i, j, l: (i, j)),
            scratch_shapes=[pltpu.VMEM((tm, tn), jnp.float32)],
        ),
        compiler_params=pltpu.CompilerParams(
            dimension_semantics=("parallel", "parallel", "arbitrary")),
        cost_estimate=cost,
    )(a_hat, x, w, bias)


# ------------------------------ JAX glue ------------------------------------

def _round_up(x, m):
    return -(-x // m) * m


def _pad2(a, rows, cols):
    return jnp.pad(a, ((0, rows - a.shape[0]), (0, cols - a.shape[1])))


def _choose_node_pad(n):
    """256-aligned for small graphs (min padded A_hat bytes); 512/1024-aligned
    once the relative padding overhead is small, enabling tm=512 / tk=1024."""
    base = _round_up(max(n, 1), 256)
    best = base
    for align in (512, 1024):
        p = _round_up(n, align)
        if p * p <= 1.3 * base * base:
            best = p
    return best


def normalized_adjacency(edge_index, num_nodes):
    """Dense D^{-1/2} (A + I) D^{-1/2} matching PyG gcn_norm semantics:
    duplicate edges accumulate; existing self-loops are replaced by weight-1
    self-loops (add_remaining_self_loops, fill_value=1)."""
    src, dst = edge_index[0], edge_index[1]
    w = jnp.where(src == dst, 0.0, 1.0)                    # drop existing self-loops
    a = jnp.zeros((num_nodes, num_nodes), jnp.float32)
    a = a.at[dst, src].add(w)                              # scatter-add duplicates
    diag = jnp.arange(num_nodes)
    a = a.at[diag, diag].set(1.0)                          # weight-1 self-loops
    deg = a.sum(axis=1)
    dinv = jnp.where(deg > 0, 1.0 / jnp.sqrt(deg), 0.0)
    return dinv[:, None] * a * dinv[None, :]


LANE = 128  # feature / hidden / class dims pad to 128 (lane-dense, MXU aligned)


@functools.partial(jax.jit, static_argnames=("compute_dtype",))
def gcn_forward(params, x, edge_index, *, compute_dtype=jnp.bfloat16):
    n, f = x.shape
    w1, b1 = params["w1"], params["b1"]
    w2, b2 = params["w2"], params["b2"]
    h1, h2 = w1.shape[1], w2.shape[1]

    n_pad = _choose_node_pad(n)
    f_pad = _round_up(f, LANE)
    h1_pad = _round_up(h1, LANE)
    h2_pad = _round_up(h2, LANE)

    # Normalized adjacency built once inside jit and reused by both layers.
    a_hat = normalized_adjacency(edge_index, n)
    a_p = _pad2(a_hat, n_pad, n_pad).astype(compute_dtype)
    x_p = _pad2(x, n_pad, f_pad).astype(compute_dtype)
    w1_p = _pad2(w1, f_pad, h1_pad).astype(compute_dtype)
    w2_p = _pad2(w2, h1_pad, h2_pad).astype(compute_dtype)
    b1_p = _pad2(b1, 1, h1_pad)   # biases stay f32 (added onto f32 accumulator)
    b2_p = _pad2(b2, 1, h2_pad)

    # ---- layer 1 (fused): relu(A_hat @ (X @ W1) + b1) ----
    h = gcn_conv(a_p, x_p, w1_p, b1_p, apply_relu=True, out_dtype=compute_dtype)

    # dropout(p=0.5) in eval mode is the identity.
    # TODO(synk): training-mode dropout via pltpu.prng_* not implemented.

    # ---- layer 2 (fused): A_hat @ (h @ W2) + b2 ----
    out = gcn_conv(a_p, h, w2_p, b2_p, apply_relu=False, out_dtype=jnp.float32)

    return out[:n, :h2]


def glorot(key, shape):
    fan_in, fan_out = shape
    limit = jnp.sqrt(6.0 / (fan_in + fan_out))
    return jax.random.uniform(key, shape, jnp.float32, -limit, limit)


class GCNPallas:
    """Two-layer GCN matching the PyTorch module's forward (eval mode)."""

    def __init__(self, num_features, hidden_channels, num_classes, key):
        k1, k2 = jax.random.split(key)
        self.params = {
            "w1": glorot(k1, (num_features, hidden_channels)),
            "b1": jnp.zeros((1, hidden_channels), jnp.float32),
            "w2": glorot(k2, (hidden_channels, num_classes)),
            "b2": jnp.zeros((1, num_classes), jnp.float32),
        }

    def __call__(self, x, edge_index, compute_dtype=jnp.bfloat16):
        return gcn_forward(self.params, x, edge_index,
                           compute_dtype=compute_dtype)


# ------------------------------- demo ---------------------------------------

if __name__ == "__main__":
    key = jax.random.PRNGKey(0)
    k_feat, k_edge, k_param = jax.random.split(key, 3)

    NUM_NODES = 64
    NUM_FEATURES = 32
    HIDDEN = 16
    NUM_CLASSES = 8
    NUM_EDGES = 256

    # Row-normalized node features (mimics NormalizeFeatures transform).
    x = jax.random.uniform(k_feat, (NUM_NODES, NUM_FEATURES), jnp.float32)
    x = x / jnp.clip(x.sum(axis=-1, keepdims=True), 1e-12)

    # Random edge list, shape [2, E] like PyG edge_index.
    edge_index = jax.random.randint(k_edge, (2, NUM_EDGES), 0, NUM_NODES,
                                    dtype=jnp.int32)

    model = GCNPallas(NUM_FEATURES, HIDDEN, NUM_CLASSES, k_param)

    # Pure-JAX f32 reference of the forward path (same gcn_norm semantics).
    a_hat_ref = normalized_adjacency(edge_index, NUM_NODES)
    ref = jnp.maximum(a_hat_ref @ (x @ model.params["w1"]) + model.params["b1"], 0.0)
    ref = a_hat_ref @ (ref @ model.params["w2"]) + model.params["b2"]

    # f32 compute path: must match the reference tightly.
    out_f32 = jax.block_until_ready(model(x, edge_index, compute_dtype=jnp.float32))
    assert out_f32.shape == (NUM_NODES, NUM_CLASSES)
    assert out_f32.dtype == jnp.float32
    assert bool(jnp.all(jnp.isfinite(out_f32)))
    assert bool(jnp.allclose(out_f32, ref, atol=1e-4, rtol=1e-4))

    # bf16 compute path (the performance default): loose tolerance.
    out_bf16 = jax.block_until_ready(model(x, edge_index))
    assert out_bf16.shape == (NUM_NODES, NUM_CLASSES)
    assert out_bf16.dtype == jnp.float32
    assert bool(jnp.all(jnp.isfinite(out_bf16)))
    assert bool(jnp.allclose(out_bf16, ref, atol=5e-2, rtol=5e-2))

    print("KERNEL_OK")
</pallas_src>

<mosaic_0001>
module attributes {stable_mosaic.version = 11 : i64} {
  func.func private @main(%arg0: i32) attributes {dimension_semantics = [#tpu.dimension_semantics<core_parallel>], iteration_bounds = array<i64: 2>, tpu.core_type = #tpu.core_type<sc_scalar_subcore>, window_params = []} {
    return
  }
}

module attributes {stable_mosaic.version = 11 : i64} {
  func.func private @main(%arg0: i32) attributes {dimension_semantics = [#tpu.dimension_semantics<core_parallel>], iteration_bounds = array<i64: 2>, tpu.core_type = #tpu.core_type<sc_scalar_subcore>, window_params = []} {
    return
  }
}

module attributes {stable_mosaic.version = 11 : i64} {
  func.func @_gcn_conv_kernel(%arg0: i32, %arg1: i32, %arg2: i32, %arg3: memref<128x256xf32, #tpu.memory_space<vmem>>, %arg4: memref<256x128xf32, #tpu.memory_space<vmem>>, %arg5: memref<128x128xf32, #tpu.memory_space<vmem>>, %arg6: memref<1x128xf32, #tpu.memory_space<vmem>>, %arg7: memref<128x128xf32, #tpu.memory_space<vmem>>, %arg8: memref<128x128xf32, #tpu.memory_space<vmem>>) attributes {dimension_semantics = [#tpu.dimension_semantics<parallel>, #tpu.dimension_semantics<parallel>, #tpu.dimension_semantics<arbitrary>], iteration_bounds = array<i64: 2, 1, 1>, scalar_prefetch = 0 : i64, scratch_operands = 1 : i64, tpu.core_type = #tpu.core_type<tc>, window_params = [{transform_indices = @transform_0, window_bounds = array<i64: 128, 256>}, {transform_indices = @transform_1, window_bounds = array<i64: 256, 128>}, {transform_indices = @transform_2, window_bounds = array<i64: 128, 128>}, {transform_indices = @transform_3, window_bounds = array<i64: 1, 128>}, {transform_indices = @transform_4, window_bounds = array<i64: 128, 128>}]} {
    %c0 = arith.constant 0 : index
    %c0_0 = arith.constant 0 : index
    %0 = vector.load %arg4[%c0, %c0_0] : memref<256x128xf32, #tpu.memory_space<vmem>>, vector<256x128xf32>
    %c0_1 = arith.constant 0 : index
    %c0_2 = arith.constant 0 : index
    %1 = vector.load %arg5[%c0_1, %c0_2] : memref<128x128xf32, #tpu.memory_space<vmem>>, vector<128x128xf32>
    %cst = arith.constant dense<0.000000e+00> : vector<256x128xf32>
    %2 = tpu.matmul %0, %1, %cst {dimension_numbers = #tpu.dot_dimension_numbers<[1], [0], [0], [1], [0, 0, 1, 1], [], []>} : vector<256x128xf32>, vector<128x128xf32>, vector<256x128xf32> -> vector<256x128xf32>
    %c0_3 = arith.constant 0 : index
    %c0_4 = arith.constant 0 : index
    %3 = vector.load %arg3[%c0_3, %c0_4] : memref<128x256xf32, #tpu.memory_space<vmem>>, vector<128x256xf32>
    %cst_5 = arith.constant dense<0.000000e+00> : vector<128x128xf32>
    %4 = tpu.matmul %3, %2, %cst_5 {dimension_numbers = #tpu.dot_dimension_numbers<[1], [0], [0], [1], [0, 0, 1, 1], [], []>} : vector<128x256xf32>, vector<256x128xf32>, vector<128x128xf32> -> vector<128x128xf32>
    %c0_i32 = arith.constant 0 : i32
    %5 = arith.cmpi eq, %arg2, %c0_i32 : i32
    %6 = arith.extui %5 : i1 to i32
    %c0_i32_6 = arith.constant 0 : i32
    %7 = arith.cmpi ne, %6, %c0_i32_6 : i32
    scf.if %7 {
      %c0_11 = arith.constant 0 : index
      %c0_12 = arith.constant 0 : index
      %14 = vector.load %arg8[%c0_11, %c0_12] : memref<128x128xf32, #tpu.memory_space<vmem>>, vector<128x128xf32>
      tpu.vector_store %arg8[%c0_11, %c0_12], %4 {strides = array<i32>} : memref<128x128xf32, #tpu.memory_space<vmem>>, vector<128x128xf32>,
    } else {
    }
    %c0_i32_7 = arith.constant 0 : i32
    %8 = arith.cmpi sgt, %arg2, %c0_i32_7 : i32
    %9 = arith.extui %8 : i1 to i32
    %c0_i32_8 = arith.constant 0 : i32
    %10 = arith.cmpi ne, %9, %c0_i32_8 : i32
    scf.if %10 {
      %c0_11 = arith.constant 0 : index
      %c0_12 = arith.constant 0 : index
      %14 = vector.load %arg8[%c0_11, %c0_12] : memref<128x128xf32, #tpu.memory_space<vmem>>, vector<128x128xf32>
      %15 = arith.addf %14, %4 : vector<128x128xf32>
      %c0_13 = arith.constant 0 : index
      %c0_14 = arith.constant 0 : index
      %16 = vector.load %arg8[%c0_13, %c0_14] : memref<128x128xf32, #tpu.memory_space<vmem>>, vector<128x128xf32>
      tpu.vector_store %arg8[%c0_13, %c0_14], %15 {strides = array<i32>} : memref<128x128xf32, #tpu.memory_space<vmem>>, vector<128x128xf32>,
    } else {
    }
    %c0_i32_9 = arith.constant 0 : i32
    %11 = arith.cmpi eq, %arg2, %c0_i32_9 : i32
    %12 = arith.extui %11 : i1 to i32
    %c0_i32_10 = arith.constant 0 : i32
    %13 = arith.cmpi ne, %12, %c0_i32_10 : i32
    scf.if %13 {
      %c0_11 = arith.constant 0 : index
      %c0_12 = arith.constant 0 : index
      %14 = vector.load %arg8[%c0_11, %c0_12] : memref<128x128xf32, #tpu.memory_space<vmem>>, vector<128x128xf32>
      %c0_13 = arith.constant 0 : index
      %c0_14 = arith.constant 0 : index
      %15 = vector.load %arg6[%c0_13, %c0_14] : memref<1x128xf32, #tpu.memory_space<vmem>>, vector<1x128xf32>
      %16 = vector.broadcast %15 : vector<1x128xf32> to vector<128x128xf32>
      %17 = arith.addf %14, %16 : vector<128x128xf32>
      %cst_15 = arith.constant 0.000000e+00 : f32
      %18 = vector.broadcast %cst_15 : f32 to vector<128x128xf32>
      %19 = arith.maximumf %17, %18 : vector<128x128xf32>
      %c0_16 = arith.constant 0 : index
      %c0_17 = arith.constant 0 : index
      %20 = vector.load %arg7[%c0_16, %c0_17] : memref<128x128xf32, #tpu.memory_space<vmem>>, vector<128x128xf32>
      tpu.vector_store %arg7[%c0_16, %c0_17], %19 {strides = array<i32>} : memref<128x128xf32, #tpu.memory_space<vmem>>, vector<128x128xf32>,
    } else {
    }
    return
  }
  func.func @transform_0(%arg0: i32, %arg1: i32, %arg2: i32) -> (i32, i32) {
    %c0_i32 = arith.constant 0 : i32
    return %arg0, %arg2 : i32, i32
  }
  func.func @transform_1(%arg0: i32, %arg1: i32, %arg2: i32) -> (i32, i32) {
    %c0_i32 = arith.constant 0 : i32
    %c0_i32_0 = arith.constant 0 : i32
    return %arg2, %c0_i32 : i32, i32
  }
  func.func @transform_2(%arg0: i32, %arg1: i32, %arg2: i32) -> (i32, i32) {
    %c0_i32 = arith.constant 0 : i32
    %c0_i32_0 = arith.constant 0 : i32
    return %c0_i32, %arg1 : i32, i32
  }
  func.func @transform_3(%arg0: i32, %arg1: i32, %arg2: i32) -> (i32, i32) {
    %c0_i32 = arith.constant 0 : i32
    %c0_i32_0 = arith.constant 0 : i32
    return %c0_i32, %arg1 : i32, i32
  }
  func.func @transform_4(%arg0: i32, %arg1: i32, %arg2: i32) -> (i32, i32) {
    %c0_i32 = arith.constant 0 : i32
    return %arg0, %arg1 : i32, i32
  }
}

module attributes {stable_mosaic.version = 11 : i64} {
  func.func @_gcn_conv_kernel(%arg0: i32, %arg1: i32, %arg2: i32, %arg3: memref<128x256xf32, #tpu.memory_space<vmem>>, %arg4: memref<256x128xf32, #tpu.memory_space<vmem>>, %arg5: memref<128x128xf32, #tpu.memory_space<vmem>>, %arg6: memref<1x128xf32, #tpu.memory_space<vmem>>, %arg7: memref<128x128xf32, #tpu.memory_space<vmem>>, %arg8: memref<128x128xf32, #tpu.memory_space<vmem>>) attributes {dimension_semantics = [#tpu.dimension_semantics<parallel>, #tpu.dimension_semantics<parallel>, #tpu.dimension_semantics<arbitrary>], iteration_bounds = array<i64: 2, 1, 1>, scalar_prefetch = 0 : i64, scratch_operands = 1 : i64, tpu.core_type = #tpu.core_type<tc>, window_params = [{transform_indices = @transform_0, window_bounds = array<i64: 128, 256>}, {transform_indices = @transform_1, window_bounds = array<i64: 256, 128>}, {transform_indices = @transform_2, window_bounds = array<i64: 128, 128>}, {transform_indices = @transform_3, window_bounds = array<i64: 1, 128>}, {transform_indices = @transform_4, window_bounds = array<i64: 128, 128>}]} {
    %c0 = arith.constant 0 : index
    %c0_0 = arith.constant 0 : index
    %0 = vector.load %arg4[%c0, %c0_0] : memref<256x128xf32, #tpu.memory_space<vmem>>, vector<256x128xf32>
    %c0_1 = arith.constant 0 : index
    %c0_2 = arith.constant 0 : index
    %1 = vector.load %arg5[%c0_1, %c0_2] : memref<128x128xf32, #tpu.memory_space<vmem>>, vector<128x128xf32>
    %cst = arith.constant dense<0.000000e+00> : vector<256x128xf32>
    %2 = tpu.matmul %0, %1, %cst {dimension_numbers = #tpu.dot_dimension_numbers<[1], [0], [0], [1], [0, 0, 1, 1], [], []>} : vector<256x128xf32>, vector<128x128xf32>, vector<256x128xf32> -> vector<256x128xf32>
    %c0_3 = arith.constant 0 : index
    %c0_4 = arith.constant 0 : index
    %3 = vector.load %arg3[%c0_3, %c0_4] : memref<128x256xf32, #tpu.memory_space<vmem>>, vector<128x256xf32>
    %cst_5 = arith.constant dense<0.000000e+00> : vector<128x128xf32>
    %4 = tpu.matmul %3, %2, %cst_5 {dimension_numbers = #tpu.dot_dimension_numbers<[1], [0], [0], [1], [0, 0, 1, 1], [], []>} : vector<128x256xf32>, vector<256x128xf32>, vector<128x128xf32> -> vector<128x128xf32>
    %c0_i32 = arith.constant 0 : i32
    %5 = arith.cmpi eq, %arg2, %c0_i32 : i32
    %6 = arith.extui %5 : i1 to i32
    %c0_i32_6 = arith.constant 0 : i32
    %7 = arith.cmpi ne, %6, %c0_i32_6 : i32
    scf.if %7 {
      %c0_11 = arith.constant 0 : index
      %c0_12 = arith.constant 0 : index
      %14 = vector.load %arg8[%c0_11, %c0_12] : memref<128x128xf32, #tpu.memory_space<vmem>>, vector<128x128xf32>
      tpu.vector_store %arg8[%c0_11, %c0_12], %4 {strides = array<i32>} : memref<128x128xf32, #tpu.memory_space<vmem>>, vector<128x128xf32>,
    } else {
    }
    %c0_i32_7 = arith.constant 0 : i32
    %8 = arith.cmpi sgt, %arg2, %c0_i32_7 : i32
    %9 = arith.extui %8 : i1 to i32
    %c0_i32_8 = arith.constant 0 : i32
    %10 = arith.cmpi ne, %9, %c0_i32_8 : i32
    scf.if %10 {
      %c0_11 = arith.constant 0 : index
      %c0_12 = arith.constant 0 : index
      %14 = vector.load %arg8[%c0_11, %c0_12] : memref<128x128xf32, #tpu.memory_space<vmem>>, vector<128x128xf32>
      %15 = arith.addf %14, %4 : vector<128x128xf32>
      %c0_13 = arith.constant 0 : index
      %c0_14 = arith.constant 0 : index
      %16 = vector.load %arg8[%c0_13, %c0_14] : memref<128x128xf32, #tpu.memory_space<vmem>>, vector<128x128xf32>
      tpu.vector_store %arg8[%c0_13, %c0_14], %15 {strides = array<i32>} : memref<128x128xf32, #tpu.memory_space<vmem>>, vector<128x128xf32>,
    } else {
    }
    %c0_i32_9 = arith.constant 0 : i32
    %11 = arith.cmpi eq, %arg2, %c0_i32_9 : i32
    %12 = arith.extui %11 : i1 to i32
    %c0_i32_10 = arith.constant 0 : i32
    %13 = arith.cmpi ne, %12, %c0_i32_10 : i32
    scf.if %13 {
      %c0_11 = arith.constant 0 : index
      %c0_12 = arith.constant 0 : index
      %14 = vector.load %arg8[%c0_11, %c0_12] : memref<128x128xf32, #tpu.memory_space<vmem>>, vector<128x128xf32>
      %c0_13 = arith.constant 0 : index
      %c0_14 = arith.constant 0 : index
      %15 = vector.load %arg6[%c0_13, %c0_14] : memref<1x128xf32, #tpu.memory_space<vmem>>, vector<1x128xf32>
      %16 = vector.broadcast %15 : vector<1x128xf32> to vector<128x128xf32>
      %17 = arith.addf %14, %16 : vector<128x128xf32>
      %c0_15 = arith.constant 0 : index
      %c0_16 = arith.constant 0 : index
      %18 = vector.load %arg7[%c0_15, %c0_16] : memref<128x128xf32, #tpu.memory_space<vmem>>, vector<128x128xf32>
      tpu.vector_store %arg7[%c0_15, %c0_16], %17 {strides = array<i32>} : memref<128x128xf32, #tpu.memory_space<vmem>>, vector<128x128xf32>,
    } else {
    }
    return
  }
  func.func @transform_0(%arg0: i32, %arg1: i32, %arg2: i32) -> (i32, i32) {
    %c0_i32 = arith.constant 0 : i32
    return %arg0, %arg2 : i32, i32
  }
  func.func @transform_1(%arg0: i32, %arg1: i32, %arg2: i32) -> (i32, i32) {
    %c0_i32 = arith.constant 0 : i32
    %c0_i32_0 = arith.constant 0 : i32
    return %arg2, %c0_i32 : i32, i32
  }
  func.func @transform_2(%arg0: i32, %arg1: i32, %arg2: i32) -> (i32, i32) {
    %c0_i32 = arith.constant 0 : i32
    %c0_i32_0 = arith.constant 0 : i32
    return %c0_i32, %arg1 : i32, i32
  }
  func.func @transform_3(%arg0: i32, %arg1: i32, %arg2: i32) -> (i32, i32) {
    %c0_i32 = arith.constant 0 : i32
    %c0_i32_0 = arith.constant 0 : i32
    return %c0_i32, %arg1 : i32, i32
  }
  func.func @transform_4(%arg0: i32, %arg1: i32, %arg2: i32) -> (i32, i32) {
    %c0_i32 = arith.constant 0 : i32
    return %arg0, %arg1 : i32, i32
  }
}

</mosaic_0001>

<llo_original>
// kernel: gcn_forward.3
$region0: #{gcn_forward.3}
  #allocation0 [shape = 'u32[]', space=smem, size = 0x4, offset = 0x4, fixed_abs, tag = 'smem constant byte address 0x4 - core index']
  #allocation1 [shape = 'u32[144,128]{1,0:T(1,128)}', space=vmem, size = 0x12000, scoped, tag = 'internal scratch']
  #allocation2 [shape = 'f32[128,128]{1,0:T(8,128)}', space=vmem, size = 0x10000, scoped, tag = 'scratch operand']
  %s0 = inlined_call_operand.vmem [shape: f32[256,256], index: 0, kind: input, shape index: {}]
  %s1 = inlined_call_operand.vmem [shape: f32[256,128], index: 1, kind: input, shape index: {}]
  %s2 = inlined_call_operand.vmem [shape: f32[128,128], index: 2, kind: input, shape index: {}]
  %s3 = inlined_call_operand.vmem [shape: f32[1,128], index: 3, kind: input, shape index: {}]
  %s4 = inlined_call_operand.vmem [shape: f32[256,128], index: 4, kind: output, shape index: {}]
  %s5 = sld [smem:[#allocation0]]
  $region61: #{gcn_forward.3} parent=0
    _
  %s7 = ssub.s32 1, %s5
  %s8 = scalar_select 0, %s7, %s5
  loop: start=0, step=1, limit=4
  $region2: #{gcn_forward.3} parent=0 // loop_pre_header
    _
  $region3: #{gcn_forward.3} parent=0 // loop_header
    %s10 = sphi 0, %s14
    %p11 = scmp.ge.s32.totalorder %s10, 4
    %s17 = sphi 0, %s36
    %s18 = sphi 0, %s32
    %s19 = sphi 0, %s28
    %s20 = sphi 0, %s17
    %s21 = sphi 0, %s18
    %s22 = sphi 0, %s19
    %s23 = sphi 0, %s20
    %s24 = sphi 0, %s21
    %s25 = sphi 0, %s22
    %s41 = sphi 0, %s43
    %s44 = sphi 0, %s41
    %s45 = sphi 0, %s44
    %s61 = sphi 0, %s45
    %s67 = sphi 0, %s69
    %s70 = sphi 0, %s67
    %s71 = sphi 0, %s70
    %s87 = sphi 0, %s71
    %s93 = sphi 0, %s95
    %s96 = sphi 0, %s93
    %s97 = sphi 0, %s96
    %s113 = sphi 0, %s97
    %s119 = sphi 0, %s121
    %s122 = sphi 0, %s119
    %s123 = sphi 0, %s122
    %s139 = sphi 0, %s123
    %s147 = sphi 0, %s149
    %s150 = sphi 0, %s147
    %s151 = sphi 0, %s150
    %s167 = sphi 0, %s151
  $region4: #{gcn_forward.3} parent=0 // loop_header_branch
    %13 = sbr.rel (%p11) target = $region8
  $region5: #{gcn_forward.3} parent=0 // loop_body
    %s15 = ssub.s32 %s10, 1
    %s16 = ssub.s32 %s10, 2
    %s26 = sadd.s32 1, %s19
    %p27 = scmp.ge.s32.totalorder %s26, 1
    %s28 = scalar_select %p27, 0, %s26
    %s29 = sadd.s32 1, %s18
    %s30 = scalar_select %p27, %s29, %s18
    %p31 = scmp.ge.s32.totalorder %s30, 1
    %s32 = scalar_select %p31, 0, %s30
    %s33 = sadd.s32 1, %s17
    %s34 = scalar_select %p31, %s33, %s17
    %p35 = scmp.ge.s32.totalorder %s34, 2
    %s36 = scalar_select %p35, 0, %s34
    %s37 = ssub.s32 %s17, %s36
    %s38 = ssub.s32 %s19, %s28
    %s39 = sor.u32 %s37, %s38
    %p40 = scmp.eq.s32.totalorder %s39, 0
    %s42 = sadd.s32 %s41, 1
    %s43 = scalar_select %p40, %s41, %s42
    %p46 = pneg %p40
    %p47 = scmp.eq.s32.totalorder %s10, 1
    %p48 = por %p46, %p47
    %p49 = scmp.ne.s32.totalorder %s41, %s44
    %p50 = scmp.eq.s32.totalorder %s10, 0
    %p51 = por %p49, %p50
    %p52 = scmp.ne.s32.totalorder %s41, %s44
    %p53 = scmp.eq.s32.totalorder %s15, 1
    %p54 = por %p52, %p53
    %p55 = scmp.ne.s32.totalorder %s44, %s45
    %p56 = scmp.eq.s32.totalorder %s15, 0
    %p57 = por %p55, %p56
    %p58 = scmp.ne.s32.totalorder %s44, %s45
    %p59 = scmp.eq.s32.totalorder %s16, 1
    %p60 = por %p58, %p59
    %p62 = scmp.ne.s32.totalorder %s45, %s61
    %p63 = scmp.eq.s32.totalorder %s16, 0
    %p64 = por %p62, %p63
    %s65 = ssub.s32 %s19, %s28
    %p66 = scmp.eq.s32.totalorder %s65, 0
    %s68 = sadd.s32 %s67, 1
    %s69 = scalar_select %p66, %s67, %s68
    %p72 = pneg %p66
    %p73 = scmp.eq.s32.totalorder %s10, 1
    %p74 = por %p72, %p73
    %p75 = scmp.ne.s32.totalorder %s67, %s70
    %p76 = scmp.eq.s32.totalorder %s10, 0
    %p77 = por %p75, %p76
    %p78 = scmp.ne.s32.totalorder %s67, %s70
    %p79 = scmp.eq.s32.totalorder %s15, 1
    %p80 = por %p78, %p79
    %p81 = scmp.ne.s32.totalorder %s70, %s71
    %p82 = scmp.eq.s32.totalorder %s15, 0
    %p83 = por %p81, %p82
    %p84 = scmp.ne.s32.totalorder %s70, %s71
    %p85 = scmp.eq.s32.totalorder %s16, 1
    %p86 = por %p84, %p85
    %p88 = scmp.ne.s32.totalorder %s71, %s87
    %p89 = scmp.eq.s32.totalorder %s16, 0
    %p90 = por %p88, %p89
    %s91 = ssub.s32 %s18, %s32
    %p92 = scmp.eq.s32.totalorder %s91, 0
    %s94 = sadd.s32 %s93, 1
    %s95 = scalar_select %p92, %s93, %s94
    %p98 = pneg %p92
    %p99 = scmp.eq.s32.totalorder %s10, 1
    %p100 = por %p98, %p99
    %p101 = scmp.ne.s32.totalorder %s93, %s96
    %p102 = scmp.eq.s32.totalorder %s10, 0
    %p103 = por %p101, %p102
    %p104 = scmp.ne.s32.totalorder %s93, %s96
    %p105 = scmp.eq.s32.totalorder %s15, 1
    %p106 = por %p104, %p105
    %p107 = scmp.ne.s32.totalorder %s96, %s97
    %p108 = scmp.eq.s32.totalorder %s15, 0
    %p109 = por %p107, %p108
    %p110 = scmp.ne.s32.totalorder %s96, %s97
    %p111 = scmp.eq.s32.totalorder %s16, 1
    %p112 = por %p110, %p111
    %p114 = scmp.ne.s32.totalorder %s97, %s113
    %p115 = scmp.eq.s32.totalorder %s16, 0
    %p116 = por %p114, %p115
    %s117 = ssub.s32 %s18, %s32
    %p118 = scmp.eq.s32.totalorder %s117, 0
    %s120 = sadd.s32 %s119, 1
    %s121 = scalar_select %p118, %s119, %s120
    %p124 = pneg %p118
    %p125 = scmp.eq.s32.totalorder %s10, 1
    %p126 = por %p124, %p125
    %p127 = scmp.ne.s32.totalorder %s119, %s122
    %p128 = scmp.eq.s32.totalorder %s10, 0
    %p129 = por %p127, %p128
    %p130 = scmp.ne.s32.totalorder %s119, %s122
    %p131 = scmp.eq.s32.totalorder %s15, 1
    %p132 = por %p130, %p131
    %p133 = scmp.ne.s32.totalorder %s122, %s123
    %p134 = scmp.eq.s32.totalorder %s15, 0
    %p135 = por %p133, %p134
    %p136 = scmp.ne.s32.totalorder %s122, %s123
    %p137 = scmp.eq.s32.totalorder %s16, 1
    %p138 = por %p136, %p137
    %p140 = scmp.ne.s32.totalorder %s123, %s139
    %p141 = scmp.eq.s32.totalorder %s16, 0
    %p142 = por %p140, %p141
    %s143 = ssub.s32 %s17, %s36
    %s144 = ssub.s32 %s18, %s32
    %s145 = sor.u32 %s143, %s144
    %p146 = scmp.eq.s32.totalorder %s145, 0
    %s148 = sadd.s32 %s147, 1
    %s149 = scalar_select %p146, %s147, %s148
    %p152 = pneg %p146
    %p153 = scmp.eq.s32.totalorder %s10, 1
    %p154 = por %p152, %p153
    %p155 = scmp.ne.s32.totalorder %s147, %s150
    %p156 = scmp.eq.s32.totalorder %s10, 0
    %p157 = por %p155, %p156
    %p158 = scmp.ne.s32.totalorder %s147, %s150
    %p159 = scmp.eq.s32.totalorder %s15, 1
    %p160 = por %p158, %p159
    %p161 = scmp.ne.s32.totalorder %s150, %s151
    %p162 = scmp.eq.s32.totalorder %s15, 0
    %p163 = por %p161, %p162
    %p164 = scmp.ne.s32.totalorder %s150, %s151
    %p165 = scmp.eq.s32.totalorder %s16, 1
    %p166 = por %p164, %p165
    %p168 = scmp.ne.s32.totalorder %s151, %s167
    %p169 = scmp.eq.s32.totalorder %s16, 0
    %p170 = por %p168, %p169
    %p171 = scmp.le.s32.totalorder 1, %s10
    %p172 = scmp.lt.s32.totalorder %s10, 3
    %p173 = pnand %p171, %p172
    %p174 = pneg %p173
    // Predicated region
    $region9: #{gcn_forward.3} parent=5 // pred_check
      _
    $region10: #{gcn_forward.3} parent=5 // pred_check_branch
      %176 = sbr.rel (%p173) target = $region12
    $region11: #{gcn_forward.3} parent=5 // pred_region
      %s177 = ssub.s32 %s10, 1
      // Predicated region
      $region13: #{gcn_forward.3} parent=11 // pred_check
        %p178 = pneg %p83
      $region14: #{gcn_forward.3} parent=11 // pred_check_branch
        %180 = sbr.rel (%p178) target = $region16
      $region15: #{gcn_forward.3} parent=11 // pred_region
        %s181 = smul.u32 32, %s22
        %p182 = scmp.lt.s32.totalorder %s181, 31
        %s183 = scalar_select %p182, %s181, 31
        %s184 = smul.addr %s183, 8
        %s185 = scalar_lea.vmem %s1, %s184
        %s186 = smul.u32 32, %s22
      $region16: #{gcn_forward.3} parent=11 // pred_fallthru
        _
      // Predicated region
      $region17: #{gcn_forward.3} parent=11 // pred_check
        %p187 = pneg %p109
      $region18: #{gcn_forward.3} parent=11 // pred_check_branch
        %189 = sbr.rel (%p187) target = $region20
      $region19: #{gcn_forward.3} parent=11 // pred_region
        %p190 = scmp.lt.s32.totalorder %s21, 0
        %s191 = scalar_select %p190, %s21, 0
        %s192 = smul.addr %s191, 8
        %s193 = scalar_lea.vmem %s2, %s192
      $region20: #{gcn_forward.3} parent=11 // pred_fallthru
        _
      // Predicated region
      $region21: #{gcn_forward.3} parent=11 // pred_check
        %p194 = pneg %p135
      $region22: #{gcn_forward.3} parent=11 // pred_check_branch
        %196 = sbr.rel (%p194) target = $region24
      $region23: #{gcn_forward.3} parent=11 // pred_region
        %p197 = scmp.lt.s32.totalorder %s21, 0
        %s198 = scalar_select %p197, %s21, 0
        %s199 = scalar_lea.vmem %s3, %s198
      $region24: #{gcn_forward.3} parent=11 // pred_fallthru
        _
    $region12: #{gcn_forward.3} parent=5 // pred_fallthru
      _
    %p200 = scmp.lt.s32.totalorder %s10, 2
    // Predicated region
    $region25: #{gcn_forward.3} parent=5 // pred_check
      %p201 = pneg %p200
    $region26: #{gcn_forward.3} parent=5 // pred_check_branch
      %203 = sbr.rel (%p201) target = $region28
    $region27: #{gcn_forward.3} parent=5 // pred_region
      // Predicated region
      $region29: #{gcn_forward.3} parent=27 // pred_check
        %p204 = pneg %p51
      $region30: #{gcn_forward.3} parent=27 // pred_check_branch
        %206 = sbr.rel (%p204) target = $region32
      $region31: #{gcn_forward.3} parent=27 // pred_region
        %s207 = smul.u32 16, %s17
        %s208 = smul.u32 2, %s19
        %p209 = scmp.lt.s32.totalorder %s207, 31
        %s210 = scalar_select %p209, %s207, 31
        %p211 = scmp.lt.s32.totalorder %s208, 1
        %s212 = scalar_select %p211, %s208, 1
        %s213 = smul.addr %s210, 2
        %s214 = sadd.s32 %s212, %s213
        %s215 = smul.addr %s214, 8
        %s216 = scalar_lea.vmem %s0, %s215
        %s217 = smul.u32 16, %s17
        %s218 = smul.u32 2, %s19
      $region32: #{gcn_forward.3} parent=27 // pred_fallthru
        _
    $region28: #{gcn_forward.3} parent=5 // pred_fallthru
      _
    %p219 = scmp.le.s32.totalorder 1, %s10
    %p220 = scmp.lt.s32.totalorder %s10, 3
    %p221 = pnand %p219, %p220
    %p222 = pneg %p221
    // Predicated region
    $region33: #{gcn_forward.3} parent=5 // pred_check
      _
    $region34: #{gcn_forward.3} parent=5 // pred_check_branch
      %224 = sbr.rel (%p221) target = $region36
    $region35: #{gcn_forward.3} parent=5 // pred_region
      %s225 = ssub.s32 %s10, 1
      %s226 = smul.u32 16, %s20
      %s227 = smul.u32 2, %s22
      %p228 = scmp.lt.s32.totalorder %s226, 31
      %s229 = scalar_select %p228, %s226, 31
      %p230 = scmp.lt.s32.totalorder %s227, 1
      %s231 = scalar_select %p230, %s227, 1
      %s232 = smul.addr %s229, 2
      %s233 = sadd.s32 %s231, %s232
      %s234 = smul.addr %s233, 8
      %s235 = scalar_lea.vmem %s0, %s234
      %p236 = pneg %p57
      %p237 = pneg %p54
      %s238 = smul.u32 32, %s22
      %p239 = scmp.lt.s32.totalorder %s238, 31
      %s240 = scalar_select %p239, %s238, 31
      %s241 = smul.addr %s240, 8
      %s242 = scalar_lea.vmem %s1, %s241
      %p243 = pneg %p83
      %p244 = pneg %p80
      %p245 = scmp.lt.s32.totalorder %s21, 0
      %s246 = scalar_select %p245, %s21, 0
      %s247 = smul.addr %s246, 8
      %s248 = scalar_lea.vmem %s2, %s247
      %p249 = pneg %p109
      %p250 = pneg %p106
      %p251 = scmp.lt.s32.totalorder %s21, 0
      %s252 = scalar_select %p251, %s21, 0
      %s253 = scalar_lea.vmem %s3, %s252
      %p254 = pneg %p135
      %p255 = pneg %p132
      %p256 = pneg %p163
      %p257 = pneg %p160
      %s258 = smul.u32 16, %s20
      %p259 = scmp.lt.s32.totalorder %s258, 31
      %s260 = scalar_select %p259, %s258, 31
      %p261 = scmp.lt.s32.totalorder %s21, 0
      %s262 = scalar_select %p261, %s21, 0
      %s263 = sadd.s32 %s262, %s260
      %s264 = smul.addr %s263, 8
      %s265 = scalar_lea.vmem %s4, %s264
      %s266 = smul.u32 16, %s20
      %s267 = smul.u32 2, %s22
      %p268 = scmp.lt.s32.totalorder %s266, 31
      %s269 = scalar_select %p268, %s266, 31
      %p270 = scmp.lt.s32.totalorder %s267, 1
      %s271 = scalar_select %p270, %s267, 1
      %s272 = smul.addr %s269, 2
      %s273 = sadd.s32 %s271, %s272
      %s274 = smul.addr %s273, 8
      %s275 = scalar_lea.vmem %s0, %s274
      %s276 = smul.u32 16, %s20
      %s277 = smul.u32 2, %s22
      %s278 = smul.u32 32, %s22
      %p279 = scmp.lt.s32.totalorder %s278, 31
      %s280 = scalar_select %p279, %s278, 31
      %s281 = smul.addr %s280, 8
      %s282 = scalar_lea.vmem %s1, %s281
      %s283 = smul.u32 32, %s22
      %p284 = scmp.lt.s32.totalorder %s21, 0
      %s285 = scalar_select %p284, %s21, 0
      %s286 = smul.addr %s285, 8
      %s287 = scalar_lea.vmem %s2, %s286
      %p288 = scmp.lt.s32.totalorder %s21, 0
      %s289 = scalar_select %p288, %s21, 0
      %s290 = scalar_lea.vmem %s3, %s289
      %s291 = smul.u32 16, %s20
      %p292 = scmp.lt.s32.totalorder %s291, 31
      %s293 = scalar_select %p292, %s291, 31
      %p294 = scmp.lt.s32.totalorder %s21, 0
      %s295 = scalar_select %p294, %s21, 0
      %s296 = sadd.s32 %s295, %s293
      %s297 = smul.addr %s296, 8
      %s298 = scalar_lea.vmem %s4, %s297
      %s299 = smul.u32 16, %s20
      %v300 = vld [vmem:[%s282] sm:$0xff]
      %v301 = vld [vmem:[%s282 + $0x8] sm:$0xff]
      %v302 = vld [vmem:[%s282 + $0x10] sm:$0xff]
      %v303 = vld [vmem:[%s282 + $0x18] sm:$0xff]
      %v304 = vld [vmem:[%s282 + $0x20] sm:$0xff]
      %v305 = vld [vmem:[%s282 + $0x28] sm:$0xff]
      %v306 = vld [vmem:[%s282 + $0x30] sm:$0xff]
      %v307 = vld [vmem:[%s282 + $0x38] sm:$0xff]
      %v308 = vld [vmem:[%s282 + $0x40] sm:$0xff]
      %v309 = vld [vmem:[%s282 + $0x48] sm:$0xff]
      %v310 = vld [vmem:[%s282 + $0x50] sm:$0xff]
      %v311 = vld [vmem:[%s282 + $0x58] sm:$0xff]
      %v312 = vld [vmem:[%s282 + $0x60] sm:$0xff]
      %v313 = vld [vmem:[%s282 + $0x68] sm:$0xff]
      %v314 = vld [vmem:[%s282 + $0x70] sm:$0xff]
      %v315 = vld [vmem:[%s282 + $0x78] sm:$0xff]
      %v316 = vld [vmem:[%s282 + $0x80] sm:$0xff]
      %v317 = vld [vmem:[%s282 + $0x88] sm:$0xff]
      %v318 = vld [vmem:[%s282 + $0x90] sm:$0xff]
      %v319 = vld [vmem:[%s282 + $0x98] sm:$0xff]
      %v320 = vld [vmem:[%s282 + $0xa0] sm:$0xff]
      %v321 = vld [vmem:[%s282 + $0xa8] sm:$0xff]
      %v322 = vld [vmem:[%s282 + $0xb0] sm:$0xff]
      %v323 = vld [vmem:[%s282 + $0xb8] sm:$0xff]
      %v324 = vld [vmem:[%s282 + $0xc0] sm:$0xff]
      %v325 = vld [vmem:[%s282 + $0xc8] sm:$0xff]
      %v326 = vld [vmem:[%s282 + $0xd0] sm:$0xff]
      %v327 = vld [vmem:[%s282 + $0xd8] sm:$0xff]
      %v328 = vld [vmem:[%s282 + $0xe0] sm:$0xff]
      %v329 = vld [vmem:[%s282 + $0xe8] sm:$0xff]
      %v330 = vld [vmem:[%s282 + $0xf0] sm:$0xff]
      %v331 = vld [vmem:[%s282 + $0xf8] sm:$0xff]
      %v332 = vld [vmem:[%s287] sm:$0xff]
      %v333 = vld [vmem:[%s287 + $0x8] sm:$0xff]
      %v334 = vld [vmem:[%s287 + $0x10] sm:$0xff]
      %v335 = vld [vmem:[%s287 + $0x18] sm:$0xff]
      %v336 = vld [vmem:[%s287 + $0x20] sm:$0xff]
      %v337 = vld [vmem:[%s287 + $0x28] sm:$0xff]
      %v338 = vld [vmem:[%s287 + $0x30] sm:$0xff]
      %v339 = vld [vmem:[%s287 + $0x38] sm:$0xff]
      %v340 = vld [vmem:[%s287 + $0x40] sm:$0xff]
      %v341 = vld [vmem:[%s287 + $0x48] sm:$0xff]
      %v342 = vld [vmem:[%s287 + $0x50] sm:$0xff]
      %v343 = vld [vmem:[%s287 + $0x58] sm:$0xff]
      %v344 = vld [vmem:[%s287 + $0x60] sm:$0xff]
      %v345 = vld [vmem:[%s287 + $0x68] sm:$0xff]
      %v346 = vld [vmem:[%s287 + $0x70] sm:$0xff]
      %v347 = vld [vmem:[%s287 + $0x78] sm:$0xff]
      %348 = vmatprep.subr.mxu0 0.0
      %349 = vmatpush1.msra.mxu0 %v347
      %350 = vmatprep.subr.mxu0 0.0
      %351 = vmatpush1.msra.mxu0 %v346
      %352 = vmatprep.subr.mxu0 0.0
      %353 = vmatpush1.msra.mxu0 %v345
      %354 = vmatprep.subr.mxu0 0.0
      %355 = vmatpush1.msra.mxu0 %v344
      %356 = vmatprep.subr.mxu0 0.0
      %357 = vmatpush1.msra.mxu0 %v343
      %358 = vmatprep.subr.mxu0 0.0
      %359 = vmatpush1.msra.mxu0 %v342
      %360 = vmatprep.subr.mxu0 0.0
      %361 = vmatpush1.msra.mxu0 %v341
      %362 = vmatprep.subr.mxu0 0.0
      %363 = vmatpush1.msra.mxu0 %v340
      %364 = vmatprep.subr.mxu0 0.0
      %365 = vmatpush1.msra.mxu0 %v339
      %366 = vmatprep.subr.mxu0 0.0
      %367 = vmatpush1.msra.mxu0 %v338
      %368 = vmatprep.subr.mxu0 0.0
      %369 = vmatpush1.msra.mxu0 %v337
      %370 = vmatprep.subr.mxu0 0.0
      %371 = vmatpush1.msra.mxu0 %v336
      %372 = vmatprep.subr.mxu0 0.0
      %373 = vmatpush1.msra.mxu0 %v335
      %374 = vmatprep.subr.mxu0 0.0
      %375 = vmatpush1.msra.mxu0 %v334
      %376 = vmatprep.subr.mxu0 0.0
      %377 = vmatpush1.msra.mxu0 %v333
      %378 = vmatprep.subr.mxu0 0.0
      %379 = vmatpush1.msra.mxu0 %v332
      %380 = vmatprep.subr.mxu0 0.0
      %381 = vmatpush2.msra.mxu0 0.0
      %382 = vmatprep.subr.mxu0 0.0
      %383 = vmatpush2.msra.mxu0 0.0
      %384 = vmatprep.subr.mxu0 0.0
      %385 = vmatpush2.msra.mxu0 0.0
      %386 = vmatprep.subr.mxu0 0.0
      %387 = vmatpush2.msra.mxu0 0.0
      %388 = vmatprep.subr.mxu0 0.0
      %389 = vmatpush2.msra.mxu0 0.0
      %390 = vmatprep.subr.mxu0 0.0
      %391 = vmatpush2.msra.mxu0 0.0
      %392 = vmatprep.subr.mxu0 0.0
      %393 = vmatpush2.msra.mxu0 0.0
      %394 = vmatprep.subr.mxu0 0.0
      %395 = vmatpush2.msra.mxu0 0.0
      %396 = vmatprep.subr.mxu0 0.0
      %397 = vmatpush2.msra.mxu0 0.0
      %398 = vmatprep.subr.mxu0 0.0
      %399 = vmatpush2.msra.mxu0 0.0
      %400 = vmatprep.subr.mxu0 0.0
      %401 = vmatpush2.msra.mxu0 0.0
      %402 = vmatprep.subr.mxu0 0.0
      %403 = vmatpush2.msra.mxu0 0.0
      %404 = vmatprep.subr.mxu0 0.0
      %405 = vmatpush2.msra.mxu0 0.0
      %406 = vmatprep.subr.mxu0 0.0
      %407 = vmatpush2.msra.mxu0 0.0
      %408 = vmatprep.subr.mxu0 0.0
      %409 = vmatpush2.msra.mxu0 0.0
      %410 = vmatprep.subr.mxu0 0.0
      %411 = vmatpush2.msra.mxu0 0.0
      %412 = vmatprep.mubr.f32.mxu0 0.0
      %413 = vmatmul.mubr.f32.gmra.mxu0 %v300
      %v414 = vpop.f32.mrf.mxu0
      %v415 = vadd.f32 0.0, %v414
      %v416 = vpop.f32.mrf.mxu0
      %417 = vmatprep.mubr.f32.mxu0 0.0
      %418 = vmatmul.mubr.f32.gmra.mxu0 %v301
      %v419 = vpop.f32.mrf.mxu0
      %v420 = vadd.f32 0.0, %v419
      %v421 = vpop.f32.mrf.mxu0
      %422 = vmatprep.mubr.f32.mxu0 0.0
      %423 = vmatmul.mubr.f32.gmra.mxu0 %v302
      %v424 = vpop.f32.mrf.mxu0
      %v425 = vadd.f32 0.0, %v424
      %v426 = vpop.f32.mrf.mxu0
      %427 = vmatprep.mubr.f32.mxu0 0.0
      %428 = vmatmul.mubr.f32.gmra.mxu0 %v303
      %v429 = vpop.f32.mrf.mxu0
      %v430 = vadd.f32 0.0, %v429
      %v431 = vpop.f32.mrf.mxu0
      %432 = vmatprep.mubr.f32.mxu0 0.0
      %433 = vmatmul.mubr.f32.gmra.mxu0 %v304
      %v434 = vpop.f32.mrf.mxu0
      %v435 = vadd.f32 0.0, %v434
      %v436 = vpop.f32.mrf.mxu0
      %437 = vmatprep.mubr.f32.mxu0 0.0
      %438 = vmatmul.mubr.f32.gmra.mxu0 %v305
      %v439 = vpop.f32.mrf.mxu0
      %v440 = vadd.f32 0.0, %v439
      %v441 = vpop.f32.mrf.mxu0
      %442 = vmatprep.mubr.f32.mxu0 0.0
      %443 = vmatmul.mubr.f32.gmra.mxu0 %v306
      %v444 = vpop.f32.mrf.mxu0
      %v445 = vadd.f32 0.0, %v444
      %v446 = vpop.f32.mrf.mxu0
      %447 = vmatprep.mubr.f32.mxu0 0.0
      %448 = vmatmul.mubr.f32.gmra.mxu0 %v307
      %v449 = vpop.f32.mrf.mxu0
      %v450 = vadd.f32 0.0, %v449
      %v451 = vpop.f32.mrf.mxu0
      %452 = vmatprep.mubr.f32.mxu0 0.0
      %453 = vmatmul.mubr.f32.gmra.mxu0 %v308
      %v454 = vpop.f32.mrf.mxu0
      %v455 = vadd.f32 0.0, %v454
      %v456 = vpop.f32.mrf.mxu0
      %457 = vmatprep.mubr.f32.mxu0 0.0
      %458 = vmatmul.mubr.f32.gmra.mxu0 %v309
      %v459 = vpop.f32.mrf.mxu0
      %v460 = vadd.f32 0.0, %v459
      %v461 = vpop.f32.mrf.mxu0
      %462 = vmatprep.mubr.f32.mxu0 0.0
      %463 = vmatmul.mubr.f32.gmra.mxu0 %v310
      %v464 = vpop.f32.mrf.mxu0
      %v465 = vadd.f32 0.0, %v464
      %v466 = vpop.f32.mrf.mxu0
      %467 = vmatprep.mubr.f32.mxu0 0.0
      %468 = vmatmul.mubr.f32.gmra.mxu0 %v311
      %v469 = vpop.f32.mrf.mxu0
      %v470 = vadd.f32 0.0, %v469
      %v471 = vpop.f32.mrf.mxu0
      %472 = vmatprep.mubr.f32.mxu0 0.0
      %473 = vmatmul.mubr.f32.gmra.mxu0 %v312
      %v474 = vpop.f32.mrf.mxu0
      %v475 = vadd.f32 0.0, %v474
      %v476 = vpop.f32.mrf.mxu0
      %477 = vmatprep.mubr.f32.mxu0 0.0
      %478 = vmatmul.mubr.f32.gmra.mxu0 %v313
      %v479 = vpop.f32.mrf.mxu0
      %v480 = vadd.f32 0.0, %v479
      %v481 = vpop.f32.mrf.mxu0
      %482 = vmatprep.mubr.f32.mxu0 0.0
      %483 = vmatmul.mubr.f32.gmra.mxu0 %v314
      %v484 = vpop.f32.mrf.mxu0
      %v485 = vadd.f32 0.0, %v484
      %v486 = vpop.f32.mrf.mxu0
      %487 = vmatprep.mubr.f32.mxu0 0.0
      %488 = vmatmul.mubr.f32.gmra.mxu0 %v315
      %v489 = vpop.f32.mrf.mxu0
      %v490 = vadd.f32 0.0, %v489
      %v491 = vpop.f32.mrf.mxu0
      %492 = vmatprep.mubr.f32.mxu0 0.0
      %493 = vmatmul.mubr.f32.gmra.mxu0 %v316
      %v494 = vpop.f32.mrf.mxu0
      %v495 = vadd.f32 0.0, %v494
      %v496 = vpop.f32.mrf.mxu0
      %497 = vmatprep.mubr.f32.mxu0 0.0
      %498 = vmatmul.mubr.f32.gmra.mxu0 %v317
      %v499 = vpop.f32.mrf.mxu0
      %v500 = vadd.f32 0.0, %v499
      %v501 = vpop.f32.mrf.mxu0
      %502 = vmatprep.mubr.f32.mxu0 0.0
      %503 = vmatmul.mubr.f32.gmra.mxu0 %v318
      %v504 = vpop.f32.mrf.mxu0
      %v505 = vadd.f32 0.0, %v504
      %v506 = vpop.f32.mrf.mxu0
      %507 = vmatprep.mubr.f32.mxu0 0.0
      %508 = vmatmul.mubr.f32.gmra.mxu0 %v319
      %v509 = vpop.f32.mrf.mxu0
      %v510 = vadd.f32 0.0, %v509
      %v511 = vpop.f32.mrf.mxu0
      %512 = vmatprep.mubr.f32.mxu0 0.0
      %513 = vmatmul.mubr.f32.gmra.mxu0 %v320
      %v514 = vpop.f32.mrf.mxu0
      %v515 = vadd.f32 0.0, %v514
      %v516 = vpop.f32.mrf.mxu0
      %517 = vmatprep.mubr.f32.mxu0 0.0
      %518 = vmatmul.mubr.f32.gmra.mxu0 %v321
      %v519 = vpop.f32.mrf.mxu0
      %v520 = vadd.f32 0.0, %v519
      %v521 = vpop.f32.mrf.mxu0
      %522 = vmatprep.mubr.f32.mxu0 0.0
      %523 = vmatmul.mubr.f32.gmra.mxu0 %v322
      %v524 = vpop.f32.mrf.mxu0
      %v525 = vadd.f32 0.0, %v524
      %v526 = vpop.f32.mrf.mxu0
      %527 = vmatprep.mubr.f32.mxu0 0.0
      %528 = vmatmul.mubr.f32.gmra.mxu0 %v323
      %v529 = vpop.f32.mrf.mxu0
      %v530 = vadd.f32 0.0, %v529
      %v531 = vpop.f32.mrf.mxu0
      %532 = vmatprep.mubr.f32.mxu0 0.0
      %533 = vmatmul.mubr.f32.gmra.mxu0 %v324
      %v534 = vpop.f32.mrf.mxu0
      %v535 = vadd.f32 0.0, %v534
      %v536 = vpop.f32.mrf.mxu0
      %537 = vmatprep.mubr.f32.mxu0 0.0
      %538 = vmatmul.mubr.f32.gmra.mxu0 %v325
      %v539 = vpop.f32.mrf.mxu0
      %v540 = vadd.f32 0.0, %v539
      %v541 = vpop.f32.mrf.mxu0
      %542 = vmatprep.mubr.f32.mxu0 0.0
      %543 = vmatmul.mubr.f32.gmra.mxu0 %v326
      %v544 = vpop.f32.mrf.mxu0
      %v545 = vadd.f32 0.0, %v544
      %v546 = vpop.f32.mrf.mxu0
      %547 = vmatprep.mubr.f32.mxu0 0.0
      %548 = vmatmul.mubr.f32.gmra.mxu0 %v327
      %v549 = vpop.f32.mrf.mxu0
      %v550 = vadd.f32 0.0, %v549
      %v551 = vpop.f32.mrf.mxu0
      %552 = vmatprep.mubr.f32.mxu0 0.0
      %553 = vmatmul.mubr.f32.gmra.mxu0 %v328
      %v554 = vpop.f32.mrf.mxu0
      %v555 = vadd.f32 0.0, %v554
      %v556 = vpop.f32.mrf.mxu0
      %557 = vmatprep.mubr.f32.mxu0 0.0
      %558 = vmatmul.mubr.f32.gmra.mxu0 %v329
      %v559 = vpop.f32.mrf.mxu0
      %v560 = vadd.f32 0.0, %v559
      %v561 = vpop.f32.mrf.mxu0
      %562 = vmatprep.mubr.f32.mxu0 0.0
      %563 = vmatmul.mubr.f32.gmra.mxu0 %v330
      %v564 = vpop.f32.mrf.mxu0
      %v565 = vadd.f32 0.0, %v564
      %v566 = vpop.f32.mrf.mxu0
      %567 = vmatprep.mubr.f32.mxu0 0.0
      %568 = vmatmul.mubr.f32.gmra.mxu0 %v331
      %v569 = vpop.f32.mrf.mxu0
      %v570 = vadd.f32 0.0, %v569
      %v571 = vpop.f32.mrf.mxu0
      %572 = vdwg.mxu0
      %v573 = vld [vmem:[%s275] sm:$0xff]
      %v574 = vld [vmem:[%s275 + $0x8] sm:$0xff]
      %v575 = vld [vmem:[%s275 + $0x10] sm:$0xff]
      %v576 = vld [vmem:[%s275 + $0x18] sm:$0xff]
      %v577 = vld [vmem:[%s275 + $0x20] sm:$0xff]
      %v578 = vld [vmem:[%s275 + $0x28] sm:$0xff]
      %v579 = vld [vmem:[%s275 + $0x30] sm:$0xff]
      %v580 = vld [vmem:[%s275 + $0x38] sm:$0xff]
      %v581 = vld [vmem:[%s275 + $0x40] sm:$0xff]
      %v582 = vld [vmem:[%s275 + $0x48] sm:$0xff]
      %v583 = vld [vmem:[%s275 + $0x50] sm:$0xff]
      %v584 = vld [vmem:[%s275 + $0x58] sm:$0xff]
      %v585 = vld [vmem:[%s275 + $0x60] sm:$0xff]
      %v586 = vld [vmem:[%s275 + $0x68] sm:$0xff]
      %v587 = vld [vmem:[%s275 + $0x70] sm:$0xff]
      %v588 = vld [vmem:[%s275 + $0x78] sm:$0xff]
      %v589 = vld [vmem:[%s275 + $0x80] sm:$0xff]
      %v590 = vld [vmem:[%s275 + $0x88] sm:$0xff]
      %v591 = vld [vmem:[%s275 + $0x90] sm:$0xff]
      %v592 = vld [vmem:[%s275 + $0x98] sm:$0xff]
      %v593 = vld [vmem:[%s275 + $0xa0] sm:$0xff]
      %v594 = vld [vmem:[%s275 + $0xa8] sm:$0xff]
      %v595 = vld [vmem:[%s275 + $0xb0] sm:$0xff]
      %v596 = vld [vmem:[%s275 + $0xb8] sm:$0xff]
      %v597 = vld [vmem:[%s275 + $0xc0] sm:$0xff]
      %v598 = vld [vmem:[%s275 + $0xc8] sm:$0xff]
      %v599 = vld [vmem:[%s275 + $0xd0] sm:$0xff]
      %v600 = vld [vmem:[%s275 + $0xd8] sm:$0xff]
      %v601 = vld [vmem:[%s275 + $0xe0] sm:$0xff]
      %v602 = vld [vmem:[%s275 + $0xe8] sm:$0xff]
      %v603 = vld [vmem:[%s275 + $0xf0] sm:$0xff]
      %v604 = vld [vmem:[%s275 + $0xf8] sm:$0xff]
      %605 = vmatprep.subr.mxu0 0.0
      %606 = vmatpush1.msra.mxu0 %v490
      %607 = vmatprep.subr.mxu0 0.0
      %608 = vmatpush1.msra.mxu0 %v485
      %609 = vmatprep.subr.mxu0 0.0
      %610 = vmatpush1.msra.mxu0 %v480
      %611 = vmatprep.subr.mxu0 0.0
      %612 = vmatpush1.msra.mxu0 %v475
      %613 = vmatprep.subr.mxu0 0.0
      %614 = vmatpush1.msra.mxu0 %v470
      %615 = vmatprep.subr.mxu0 0.0
      %616 = vmatpush1.msra.mxu0 %v465
      %617 = vmatprep.subr.mxu0 0.0
      %618 = vmatpush1.msra.mxu0 %v460
      %619 = vmatprep.subr.mxu0 0.0
      %620 = vmatpush1.msra.mxu0 %v455
      %621 = vmatprep.subr.mxu0 0.0
      %622 = vmatpush1.msra.mxu0 %v450
      %623 = vmatprep.subr.mxu0 0.0
      %624 = vmatpush1.msra.mxu0 %v445
      %625 = vmatprep.subr.mxu0 0.0
      %626 = vmatpush1.msra.mxu0 %v440
      %627 = vmatprep.subr.mxu0 0.0
      %628 = vmatpush1.msra.mxu0 %v435
      %629 = vmatprep.subr.mxu0 0.0
      %630 = vmatpush1.msra.mxu0 %v430
      %631 = vmatprep.subr.mxu0 0.0
      %632 = vmatpush1.msra.mxu0 %v425
      %633 = vmatprep.subr.mxu0 0.0
      %634 = vmatpush1.msra.mxu0 %v420
      %635 = vmatprep.subr.mxu0 0.0
      %636 = vmatpush1.msra.mxu0 %v415
      %637 = vmatprep.subr.mxu0 0.0
      %638 = vmatpush2.msra.mxu0 %v570
      %639 = vmatprep.subr.mxu0 0.0
      %640 = vmatpush2.msra.mxu0 %v565
      %641 = vmatprep.subr.mxu0 0.0
      %642 = vmatpush2.msra.mxu0 %v560
      %643 = vmatprep.subr.mxu0 0.0
      %644 = vmatpush2.msra.mxu0 %v555
      %645 = vmatprep.subr.mxu0 0.0
      %646 = vmatpush2.msra.mxu0 %v550
      %647 = vmatprep.subr.mxu0 0.0
      %648 = vmatpush2.msra.mxu0 %v545
      %649 = vmatprep.subr.mxu0 0.0
      %650 = vmatpush2.msra.mxu0 %v540
      %651 = vmatprep.subr.mxu0 0.0
      %652 = vmatpush2.msra.mxu0 %v535
      %653 = vmatprep.subr.mxu0 0.0
      %654 = vmatpush2.msra.mxu0 %v530
      %655 = vmatprep.subr.mxu0 0.0
      %656 = vmatpush2.msra.mxu0 %v525
      %657 = vmatprep.subr.mxu0 0.0
      %658 = vmatpush2.msra.mxu0 %v520
      %659 = vmatprep.subr.mxu0 0.0
      %660 = vmatpush2.msra.mxu0 %v515
      %661 = vmatprep.subr.mxu0 0.0
      %662 = vmatpush2.msra.mxu0 %v510
      %663 = vmatprep.subr.mxu0 0.0
      %664 = vmatpush2.msra.mxu0 %v505
      %665 = vmatprep.subr.mxu0 0.0
      %666 = vmatpush2.msra.mxu0 %v500
      %667 = vmatprep.subr.mxu0 0.0
      %668 = vmatpush2.msra.mxu0 %v495
      %669 = vmatprep.mubr.f32.mxu0 %v574
      %670 = vmatmul.mubr.f32.gmra.mxu0 %v573
      %v671 = vpop.f32.mrf.mxu0
      %v672 = vadd.f32 0.0, %v671
      %v673 = vpop.f32.mrf.mxu0
      %674 = vmatprep.mubr.f32.mxu0 %v576
      %675 = vmatmul.mubr.f32.gmra.mxu0 %v575
      %v676 = vpop.f32.mrf.mxu0
      %v677 = vadd.f32 0.0, %v676
      %v678 = vpop.f32.mrf.mxu0
      %679 = vmatprep.mubr.f32.mxu0 %v578
      %680 = vmatmul.mubr.f32.gmra.mxu0 %v577
      %v681 = vpop.f32.mrf.mxu0
      %v682 = vadd.f32 0.0, %v681
      %v683 = vpop.f32.mrf.mxu0
      %684 = vmatprep.mubr.f32.mxu0 %v580
      %685 = vmatmul.mubr.f32.gmra.mxu0 %v579
      %v686 = vpop.f32.mrf.mxu0
      %v687 = vadd.f32 0.0, %v686
      %v688 = vpop.f32.mrf.mxu0
      %689 = vmatprep.mubr.f32.mxu0 %v582
      %690 = vmatmul.mubr.f32.gmra.mxu0 %v581
      %v691 = vpop.f32.mrf.mxu0
      %v692 = vadd.f32 0.0, %v691
      %v693 = vpop.f32.mrf.mxu0
      %694 = vmatprep.mubr.f32.mxu0 %v584
      %695 = vmatmul.mubr.f32.gmra.mxu0 %v583
      %v696 = vpop.f32.mrf.mxu0
      %v697 = vadd.f32 0.0, %v696
      %v698 = vpop.f32.mrf.mxu0
      %699 = vmatprep.mubr.f32.mxu0 %v586
      %700 = vmatmul.mubr.f32.gmra.mxu0 %v585
      %v701 = vpop.f32.mrf.mxu0
      %v702 = vadd.f32 0.0, %v701
      %v703 = vpop.f32.mrf.mxu0
      %704 = vmatprep.mubr.f32.mxu0 %v588
      %705 = vmatmul.mubr.f32.gmra.mxu0 %v587
      %v706 = vpop.f32.mrf.mxu0
      %v707 = vadd.f32 0.0, %v706
      %v708 = vpop.f32.mrf.mxu0
      %709 = vmatprep.mubr.f32.mxu0 %v590
      %710 = vmatmul.mubr.f32.gmra.mxu0 %v589
      %v711 = vpop.f32.mrf.mxu0
      %v712 = vadd.f32 0.0, %v711
      %v713 = vpop.f32.mrf.mxu0
      %714 = vmatprep.mubr.f32.mxu0 %v592
      %715 = vmatmul.mubr.f32.gmra.mxu0 %v591
      %v716 = vpop.f32.mrf.mxu0
      %v717 = vadd.f32 0.0, %v716
      %v718 = vpop.f32.mrf.mxu0
      %719 = vmatprep.mubr.f32.mxu0 %v594
      %720 = vmatmul.mubr.f32.gmra.mxu0 %v593
      %v721 = vpop.f32.mrf.mxu0
      %v722 = vadd.f32 0.0, %v721
      %v723 = vpop.f32.mrf.mxu0
      %724 = vmatprep.mubr.f32.mxu0 %v596
      %725 = vmatmul.mubr.f32.gmra.mxu0 %v595
      %v726 = vpop.f32.mrf.mxu0
      %v727 = vadd.f32 0.0, %v726
      %v728 = vpop.f32.mrf.mxu0
      %729 = vmatprep.mubr.f32.mxu0 %v598
      %730 = vmatmul.mubr.f32.gmra.mxu0 %v597
      %v731 = vpop.f32.mrf.mxu0
      %v732 = vadd.f32 0.0, %v731
      %v733 = vpop.f32.mrf.mxu0
      %734 = vmatprep.mubr.f32.mxu0 %v600
      %735 = vmatmul.mubr.f32.gmra.mxu0 %v599
      %v736 = vpop.f32.mrf.mxu0
      %v737 = vadd.f32 0.0, %v736
      %v738 = vpop.f32.mrf.mxu0
      %739 = vmatprep.mubr.f32.mxu0 %v602
      %740 = vmatmul.mubr.f32.gmra.mxu0 %v601
      %v741 = vpop.f32.mrf.mxu0
      %v742 = vadd.f32 0.0, %v741
      %v743 = vpop.f32.mrf.mxu0
      %744 = vmatprep.mubr.f32.mxu0 %v604
      %745 = vmatmul.mubr.f32.gmra.mxu0 %v603
      %v746 = vpop.f32.mrf.mxu0
      %v747 = vadd.f32 0.0, %v746
      %v748 = vpop.f32.mrf.mxu0
      %749 = vdwg.mxu0
      %p750 = scmp.eq.s32.totalorder %s22, 0
      // Predicated region
      $region37: #{gcn_forward.3} parent=35 // pred_check
        %p751 = pneg %p750
      $region38: #{gcn_forward.3} parent=35 // pred_check_branch
        %753 = sbr.rel (%p751) target = $region40
      $region39: #{gcn_forward.3} parent=35 // pred_region
        %754 = vst [vmem:[#allocation2] sm:$0xff] %v672
        %755 = vst [vmem:[#allocation2 + $0x8] sm:$0xff] %v677
        %756 = vst [vmem:[#allocation2 + $0x10] sm:$0xff] %v682
        %757 = vst [vmem:[#allocation2 + $0x18] sm:$0xff] %v687
        %758 = vst [vmem:[#allocation2 + $0x20] sm:$0xff] %v692
        %759 = vst [vmem:[#allocation2 + $0x28] sm:$0xff] %v697
        %760 = vst [vmem:[#allocation2 + $0x30] sm:$0xff] %v702
        %761 = vst [vmem:[#allocation2 + $0x38] sm:$0xff] %v707
        %762 = vst [vmem:[#allocation2 + $0x40] sm:$0xff] %v712
        %763 = vst [vmem:[#allocation2 + $0x48] sm:$0xff] %v717
        %764 = vst [vmem:[#allocation2 + $0x50] sm:$0xff] %v722
        %765 = vst [vmem:[#allocation2 + $0x58] sm:$0xff] %v727
        %766 = vst [vmem:[#allocation2 + $0x60] sm:$0xff] %v732
        %767 = vst [vmem:[#allocation2 + $0x68] sm:$0xff] %v737
        %768 = vst [vmem:[#allocation2 + $0x70] sm:$0xff] %v742
        %769 = vst [vmem:[#allocation2 + $0x78] sm:$0xff] %v747
      $region40: #{gcn_forward.3} parent=35 // pred_fallthru
        _
      %p770 = scmp.gt.s32.totalorder %s22, 0
      // Predicated region
      $region41: #{gcn_forward.3} parent=35 // pred_check
        %p771 = pneg %p770
      $region42: #{gcn_forward.3} parent=35 // pred_check_branch
        %773 = sbr.rel (%p771) target = $region44
      $region43: #{gcn_forward.3} parent=35 // pred_region
        %v774 = vld [vmem:[#allocation2] sm:$0xff]
        %v775 = vld [vmem:[#allocation2 + $0x8] sm:$0xff]
        %v776 = vld [vmem:[#allocation2 + $0x10] sm:$0xff]
        %v777 = vld [vmem:[#allocation2 + $0x18] sm:$0xff]
        %v778 = vld [vmem:[#allocation2 + $0x20] sm:$0xff]
        %v779 = vld [vmem:[#allocation2 + $0x28] sm:$0xff]
        %v780 = vld [vmem:[#allocation2 + $0x30] sm:$0xff]
        %v781 = vld [vmem:[#allocation2 + $0x38] sm:$0xff]
        %v782 = vld [vmem:[#allocation2 + $0x40] sm:$0xff]
        %v783 = vld [vmem:[#allocation2 + $0x48] sm:$0xff]
        %v784 = vld [vmem:[#allocation2 + $0x50] sm:$0xff]
        %v785 = vld [vmem:[#allocation2 + $0x58] sm:$0xff]
        %v786 = vld [vmem:[#allocation2 + $0x60] sm:$0xff]
        %v787 = vld [vmem:[#allocation2 + $0x68] sm:$0xff]
        %v788 = vld [vmem:[#allocation2 + $0x70] sm:$0xff]
        %v789 = vld [vmem:[#allocation2 + $0x78] sm:$0xff]
        %v790 = vadd.f32 %v774, %v672
        %v791 = vadd.f32 %v775, %v677
        %v792 = vadd.f32 %v776, %v682
        %v793 = vadd.f32 %v777, %v687
        %v794 = vadd.f32 %v778, %v692
        %v795 = vadd.f32 %v779, %v697
        %v796 = vadd.f32 %v780, %v702
        %v797 = vadd.f32 %v781, %v707
        %v798 = vadd.f32 %v782, %v712
        %v799 = vadd.f32 %v783, %v717
        %v800 = vadd.f32 %v784, %v722
        %v801 = vadd.f32 %v785, %v727
        %v802 = vadd.f32 %v786, %v732
        %v803 = vadd.f32 %v787, %v737
        %v804 = vadd.f32 %v788, %v742
        %v805 = vadd.f32 %v789, %v747
        %806 = vst [vmem:[#allocation2] sm:$0xff] %v790
        %807 = vst [vmem:[#allocation2 + $0x8] sm:$0xff] %v791
        %808 = vst [vmem:[#allocation2 + $0x10] sm:$0xff] %v792
        %809 = vst [vmem:[#allocation2 + $0x18] sm:$0xff] %v793
        %810 = vst [vmem:[#allocation2 + $0x20] sm:$0xff] %v794
        %811 = vst [vmem:[#allocation2 + $0x28] sm:$0xff] %v795
        %812 = vst [vmem:[#allocation2 + $0x30] sm:$0xff] %v796
        %813 = vst [vmem:[#allocation2 + $0x38] sm:$0xff] %v797
        %814 = vst [vmem:[#allocation2 + $0x40] sm:$0xff] %v798
        %815 = vst [vmem:[#allocation2 + $0x48] sm:$0xff] %v799
        %816 = vst [vmem:[#allocation2 + $0x50] sm:$0xff] %v800
        %817 = vst [vmem:[#allocation2 + $0x58] sm:$0xff] %v801
        %818 = vst [vmem:[#allocation2 + $0x60] sm:$0xff] %v802
        %819 = vst [vmem:[#allocation2 + $0x68] sm:$0xff] %v803
        %820 = vst [vmem:[#allocation2 + $0x70] sm:$0xff] %v804
        %821 = vst [vmem:[#allocation2 + $0x78] sm:$0xff] %v805
      $region44: #{gcn_forward.3} parent=35 // pred_fallthru
        _
      // Predicated region
      $region45: #{gcn_forward.3} parent=35 // pred_check
        %p822 = pneg %p750
      $region46: #{gcn_forward.3} parent=35 // pred_check_branch
        %824 = sbr.rel (%p822) target = $region48
      $region47: #{gcn_forward.3} parent=35 // pred_region
        %v825 = vld [vmem:[#allocation2] sm:$0xff]
        %v826 = vld [vmem:[#allocation2 + $0x8] sm:$0xff]
        %v827 = vld [vmem:[#allocation2 + $0x10] sm:$0xff]
        %v828 = vld [vmem:[#allocation2 + $0x18] sm:$0xff]
        %v829 = vld [vmem:[#allocation2 + $0x20] sm:$0xff]
        %v830 = vld [vmem:[#allocation2 + $0x28] sm:$0xff]
        %v831 = vld [vmem:[#allocation2 + $0x30] sm:$0xff]
        %v832 = vld [vmem:[#allocation2 + $0x38] sm:$0xff]
        %v833 = vld [vmem:[#allocation2 + $0x40] sm:$0xff]
        %v834 = vld [vmem:[#allocation2 + $0x48] sm:$0xff]
        %v835 = vld [vmem:[#allocation2 + $0x50] sm:$0xff]
        %v836 = vld [vmem:[#allocation2 + $0x58] sm:$0xff]
        %v837 = vld [vmem:[#allocation2 + $0x60] sm:$0xff]
        %v838 = vld [vmem:[#allocation2 + $0x68] sm:$0xff]
        %v839 = vld [vmem:[#allocation2 + $0x70] sm:$0xff]
        %v840 = vld [vmem:[#allocation2 + $0x78] sm:$0xff]
        %v841 = vld [vmem:[%s290] sm:$0x1]
        %v843 = vlaneseq
        %v844 = vshrl.u32 %v843, 7
        %v845 = vsub.s32 0, %v844
        %v846 = vrot.slane %v841, %v845
        %v848 = vadd.f32 %v825, %v846
        %v849 = vadd.f32 %v826, %v846
        %v850 = vadd.f32 %v827, %v846
        %v851 = vadd.f32 %v828, %v846
        %v852 = vadd.f32 %v829, %v846
        %v853 = vadd.f32 %v830, %v846
        %v854 = vadd.f32 %v831, %v846
        %v855 = vadd.f32 %v832, %v846
        %v856 = vadd.f32 %v833, %v846
        %v857 = vadd.f32 %v834, %v846
        %v858 = vadd.f32 %v835, %v846
        %v859 = vadd.f32 %v836, %v846
        %v860 = vadd.f32 %v837, %v846
        %v861 = vadd.f32 %v838, %v846
        %v862 = vadd.f32 %v839, %v846
        %v863 = vadd.f32 %v840, %v846
        %864 = vst [vmem:[%s298] sm:$0xff] %v848
        %865 = vst [vmem:[%s298 + $0x8] sm:$0xff] %v849
        %866 = vst [vmem:[%s298 + $0x10] sm:$0xff] %v850
        %867 = vst [vmem:[%s298 + $0x18] sm:$0xff] %v851
        %868 = vst [vmem:[%s298 + $0x20] sm:$0xff] %v852
        %869 = vst [vmem:[%s298 + $0x28] sm:$0xff] %v853
        %870 = vst [vmem:[%s298 + $0x30] sm:$0xff] %v854
        %871 = vst [vmem:[%s298 + $0x38] sm:$0xff] %v855
        %872 = vst [vmem:[%s298 + $0x40] sm:$0xff] %v856
        %873 = vst [vmem:[%s298 + $0x48] sm:$0xff] %v857
        %874 = vst [vmem:[%s298 + $0x50] sm:$0xff] %v858
        %875 = vst [vmem:[%s298 + $0x58] sm:$0xff] %v859
        %876 = vst [vmem:[%s298 + $0x60] sm:$0xff] %v860
        %877 = vst [vmem:[%s298 + $0x68] sm:$0xff] %v861
        %878 = vst [vmem:[%s298 + $0x70] sm:$0xff] %v862
        %879 = vst [vmem:[%s298 + $0x78] sm:$0xff] %v863
      $region48: #{gcn_forward.3} parent=35 // pred_fallthru
        _
      %s880 = smul.u32 16, %s20
      %p881 = scmp.lt.s32.totalorder %s880, 31
      %s882 = scalar_select %p881, %s880, 31
      %p883 = scmp.lt.s32.totalorder %s21, 0
      %s884 = scalar_select %p883, %s21, 0
      %s885 = sadd.s32 %s884, %s882
      %s886 = smul.addr %s885, 8
      %s887 = scalar_lea.vmem %s4, %s886
      // Predicated region
      $region49: #{gcn_forward.3} parent=35 // pred_check
        %p888 = pneg %p160
      $region50: #{gcn_forward.3} parent=35 // pred_check_branch
        %890 = sbr.rel (%p888) target = $region52
      $region51: #{gcn_forward.3} parent=35 // pred_region
        %s891 = smul.u32 16, %s20
      $region52: #{gcn_forward.3} parent=35 // pred_fallthru
        _
    $region36: #{gcn_forward.3} parent=5 // pred_fallthru
      _
    %p892 = scmp.le.s32.totalorder 2, %s10
    // Predicated region
    $region53: #{gcn_forward.3} parent=5 // pred_check
      %p893 = pneg %p892
    $region54: #{gcn_forward.3} parent=5 // pred_check_branch
      %895 = sbr.rel (%p893) target = $region56
    $region55: #{gcn_forward.3} parent=5 // pred_region
      %s896 = ssub.s32 %s10, 2
      // Predicated region
      $region57: #{gcn_forward.3} parent=55 // pred_check
        %p897 = pneg %p166
      $region58: #{gcn_forward.3} parent=55 // pred_check_branch
        %899 = sbr.rel (%p897) target = $region60
      $region59: #{gcn_forward.3} parent=55 // pred_region
        %s900 = smul.u32 16, %s23
        %p901 = scmp.lt.s32.totalorder %s900, 31
        %s902 = scalar_select %p901, %s900, 31
        %p903 = scmp.lt.s32.totalorder %s24, 0
        %s904 = scalar_select %p903, %s24, 0
        %s905 = sadd.s32 %s904, %s902
        %s906 = smul.addr %s905, 8
        %s907 = scalar_lea.vmem %s4, %s906
      $region60: #{gcn_forward.3} parent=55 // pred_fallthru
        _
    $region56: #{gcn_forward.3} parent=5 // pred_fallthru
      _
  $region6: #{gcn_forward.3} parent=0 // loop_footer
    %s14 = sadd.s32 1, %s10
  $region7: #{gcn_forward.3} parent=0 // loop_footer_branch
    %9 = sbr.rel target = $region3
  $region8: #{gcn_forward.3} parent=0 // loop_exit
    _

// kernel: gcn_forward.2
$region0: #{gcn_forward.2}
  #allocation0 [shape = 'u32[]', space=smem, size = 0x4, offset = 0x4, fixed_abs, tag = 'smem constant byte address 0x4 - core index']
  #allocation1 [shape = 'u32[144,128]{1,0:T(1,128)}', space=vmem, size = 0x12000, scoped, tag = 'internal scratch']
  #allocation2 [shape = 'f32[128,128]{1,0:T(8,128)}', space=vmem, size = 0x10000, scoped, tag = 'scratch operand']
  %s0 = inlined_call_operand.vmem [shape: f32[256,256], index: 0, kind: input, shape index: {}]
  %s1 = inlined_call_operand.vmem [shape: f32[256,128], index: 1, kind: input, shape index: {}]
  %s2 = inlined_call_operand.vmem [shape: f32[128,128], index: 2, kind: input, shape index: {}]
  %s3 = inlined_call_operand.vmem [shape: f32[1,128], index: 3, kind: input, shape index: {}]
  %s4 = inlined_call_operand.vmem [shape: f32[256,128], index: 4, kind: output, shape index: {}]
  %s5 = sld [smem:[#allocation0]]
  $region61: #{gcn_forward.2} parent=0
    _
  %s7 = ssub.s32 1, %s5
  %s8 = scalar_select 0, %s7, %s5
  loop: start=0, step=1, limit=4
  $region2: #{gcn_forward.2} parent=0 // loop_pre_header
    _
  $region3: #{gcn_forward.2} parent=0 // loop_header
    %s10 = sphi 0, %s14
    %p11 = scmp.ge.s32.totalorder %s10, 4
    %s17 = sphi 0, %s36
    %s18 = sphi 0, %s32
    %s19 = sphi 0, %s28
    %s20 = sphi 0, %s17
    %s21 = sphi 0, %s18
    %s22 = sphi 0, %s19
    %s23 = sphi 0, %s20
    %s24 = sphi 0, %s21
    %s25 = sphi 0, %s22
    %s41 = sphi 0, %s43
    %s44 = sphi 0, %s41
    %s45 = sphi 0, %s44
    %s61 = sphi 0, %s45
    %s67 = sphi 0, %s69
    %s70 = sphi 0, %s67
    %s71 = sphi 0, %s70
    %s87 = sphi 0, %s71
    %s93 = sphi 0, %s95
    %s96 = sphi 0, %s93
    %s97 = sphi 0, %s96
    %s113 = sphi 0, %s97
    %s119 = sphi 0, %s121
    %s122 = sphi 0, %s119
    %s123 = sphi 0, %s122
    %s139 = sphi 0, %s123
    %s147 = sphi 0, %s149
    %s150 = sphi 0, %s147
    %s151 = sphi 0, %s150
    %s167 = sphi 0, %s151
  $region4: #{gcn_forward.2} parent=0 // loop_header_branch
    %13 = sbr.rel (%p11) target = $region8
  $region5: #{gcn_forward.2} parent=0 // loop_body
    %s15 = ssub.s32 %s10, 1
    %s16 = ssub.s32 %s10, 2
    %s26 = sadd.s32 1, %s19
    %p27 = scmp.ge.s32.totalorder %s26, 1
    %s28 = scalar_select %p27, 0, %s26
    %s29 = sadd.s32 1, %s18
    %s30 = scalar_select %p27, %s29, %s18
    %p31 = scmp.ge.s32.totalorder %s30, 1
    %s32 = scalar_select %p31, 0, %s30
    %s33 = sadd.s32 1, %s17
    %s34 = scalar_select %p31, %s33, %s17
    %p35 = scmp.ge.s32.totalorder %s34, 2
    %s36 = scalar_select %p35, 0, %s34
    %s37 = ssub.s32 %s17, %s36
    %s38 = ssub.s32 %s19, %s28
    %s39 = sor.u32 %s37, %s38
    %p40 = scmp.eq.s32.totalorder %s39, 0
    %s42 = sadd.s32 %s41, 1
    %s43 = scalar_select %p40, %s41, %s42
    %p46 = pneg %p40
    %p47 = scmp.eq.s32.totalorder %s10, 1
    %p48 = por %p46, %p47
    %p49 = scmp.ne.s32.totalorder %s41, %s44
    %p50 = scmp.eq.s32.totalorder %s10, 0
    %p51 = por %p49, %p50
    %p52 = scmp.ne.s32.totalorder %s41, %s44
    %p53 = scmp.eq.s32.totalorder %s15, 1
    %p54 = por %p52, %p53
    %p55 = scmp.ne.s32.totalorder %s44, %s45
    %p56 = scmp.eq.s32.totalorder %s15, 0
    %p57 = por %p55, %p56
    %p58 = scmp.ne.s32.totalorder %s44, %s45
    %p59 = scmp.eq.s32.totalorder %s16, 1
    %p60 = por %p58, %p59
    %p62 = scmp.ne.s32.totalorder %s45, %s61
    %p63 = scmp.eq.s32.totalorder %s16, 0
    %p64 = por %p62, %p63
    %s65 = ssub.s32 %s19, %s28
    %p66 = scmp.eq.s32.totalorder %s65, 0
    %s68 = sadd.s32 %s67, 1
    %s69 = scalar_select %p66, %s67, %s68
    %p72 = pneg %p66
    %p73 = scmp.eq.s32.totalorder %s10, 1
    %p74 = por %p72, %p73
    %p75 = scmp.ne.s32.totalorder %s67, %s70
    %p76 = scmp.eq.s32.totalorder %s10, 0
    %p77 = por %p75, %p76
    %p78 = scmp.ne.s32.totalorder %s67, %s70
    %p79 = scmp.eq.s32.totalorder %s15, 1
    %p80 = por %p78, %p79
    %p81 = scmp.ne.s32.totalorder %s70, %s71
    %p82 = scmp.eq.s32.totalorder %s15, 0
    %p83 = por %p81, %p82
    %p84 = scmp.ne.s32.totalorder %s70, %s71
    %p85 = scmp.eq.s32.totalorder %s16, 1
    %p86 = por %p84, %p85
    %p88 = scmp.ne.s32.totalorder %s71, %s87
    %p89 = scmp.eq.s32.totalorder %s16, 0
    %p90 = por %p88, %p89
    %s91 = ssub.s32 %s18, %s32
    %p92 = scmp.eq.s32.totalorder %s91, 0
    %s94 = sadd.s32 %s93, 1
    %s95 = scalar_select %p92, %s93, %s94
    %p98 = pneg %p92
    %p99 = scmp.eq.s32.totalorder %s10, 1
    %p100 = por %p98, %p99
    %p101 = scmp.ne.s32.totalorder %s93, %s96
    %p102 = scmp.eq.s32.totalorder %s10, 0
    %p103 = por %p101, %p102
    %p104 = scmp.ne.s32.totalorder %s93, %s96
    %p105 = scmp.eq.s32.totalorder %s15, 1
    %p106 = por %p104, %p105
    %p107 = scmp.ne.s32.totalorder %s96, %s97
    %p108 = scmp.eq.s32.totalorder %s15, 0
    %p109 = por %p107, %p108
    %p110 = scmp.ne.s32.totalorder %s96, %s97
    %p111 = scmp.eq.s32.totalorder %s16, 1
    %p112 = por %p110, %p111
    %p114 = scmp.ne.s32.totalorder %s97, %s113
    %p115 = scmp.eq.s32.totalorder %s16, 0
    %p116 = por %p114, %p115
    %s117 = ssub.s32 %s18, %s32
    %p118 = scmp.eq.s32.totalorder %s117, 0
    %s120 = sadd.s32 %s119, 1
    %s121 = scalar_select %p118, %s119, %s120
    %p124 = pneg %p118
    %p125 = scmp.eq.s32.totalorder %s10, 1
    %p126 = por %p124, %p125
    %p127 = scmp.ne.s32.totalorder %s119, %s122
    %p128 = scmp.eq.s32.totalorder %s10, 0
    %p129 = por %p127, %p128
    %p130 = scmp.ne.s32.totalorder %s119, %s122
    %p131 = scmp.eq.s32.totalorder %s15, 1
    %p132 = por %p130, %p131
    %p133 = scmp.ne.s32.totalorder %s122, %s123
    %p134 = scmp.eq.s32.totalorder %s15, 0
    %p135 = por %p133, %p134
    %p136 = scmp.ne.s32.totalorder %s122, %s123
    %p137 = scmp.eq.s32.totalorder %s16, 1
    %p138 = por %p136, %p137
    %p140 = scmp.ne.s32.totalorder %s123, %s139
    %p141 = scmp.eq.s32.totalorder %s16, 0
    %p142 = por %p140, %p141
    %s143 = ssub.s32 %s17, %s36
    %s144 = ssub.s32 %s18, %s32
    %s145 = sor.u32 %s143, %s144
    %p146 = scmp.eq.s32.totalorder %s145, 0
    %s148 = sadd.s32 %s147, 1
    %s149 = scalar_select %p146, %s147, %s148
    %p152 = pneg %p146
    %p153 = scmp.eq.s32.totalorder %s10, 1
    %p154 = por %p152, %p153
    %p155 = scmp.ne.s32.totalorder %s147, %s150
    %p156 = scmp.eq.s32.totalorder %s10, 0
    %p157 = por %p155, %p156
    %p158 = scmp.ne.s32.totalorder %s147, %s150
    %p159 = scmp.eq.s32.totalorder %s15, 1
    %p160 = por %p158, %p159
    %p161 = scmp.ne.s32.totalorder %s150, %s151
    %p162 = scmp.eq.s32.totalorder %s15, 0
    %p163 = por %p161, %p162
    %p164 = scmp.ne.s32.totalorder %s150, %s151
    %p165 = scmp.eq.s32.totalorder %s16, 1
    %p166 = por %p164, %p165
    %p168 = scmp.ne.s32.totalorder %s151, %s167
    %p169 = scmp.eq.s32.totalorder %s16, 0
    %p170 = por %p168, %p169
    %p171 = scmp.le.s32.totalorder 1, %s10
    %p172 = scmp.lt.s32.totalorder %s10, 3
    %p173 = pnand %p171, %p172
    %p174 = pneg %p173
    // Predicated region
    $region9: #{gcn_forward.2} parent=5 // pred_check
      _
    $region10: #{gcn_forward.2} parent=5 // pred_check_branch
      %176 = sbr.rel (%p173) target = $region12
    $region11: #{gcn_forward.2} parent=5 // pred_region
      %s177 = ssub.s32 %s10, 1
      // Predicated region
      $region13: #{gcn_forward.2} parent=11 // pred_check
        %p178 = pneg %p83
      $region14: #{gcn_forward.2} parent=11 // pred_check_branch
        %180 = sbr.rel (%p178) target = $region16
      $region15: #{gcn_forward.2} parent=11 // pred_region
        %s181 = smul.u32 32, %s22
        %p182 = scmp.lt.s32.totalorder %s181, 31
        %s183 = scalar_select %p182, %s181, 31
        %s184 = smul.addr %s183, 8
        %s185 = scalar_lea.vmem %s1, %s184
        %s186 = smul.u32 32, %s22
      $region16: #{gcn_forward.2} parent=11 // pred_fallthru
        _
      // Predicated region
      $region17: #{gcn_forward.2} parent=11 // pred_check
        %p187 = pneg %p109
      $region18: #{gcn_forward.2} parent=11 // pred_check_branch
        %189 = sbr.rel (%p187) target = $region20
      $region19: #{gcn_forward.2} parent=11 // pred_region
        %p190 = scmp.lt.s32.totalorder %s21, 0
        %s191 = scalar_select %p190, %s21, 0
        %s192 = smul.addr %s191, 8
        %s193 = scalar_lea.vmem %s2, %s192
      $region20: #{gcn_forward.2} parent=11 // pred_fallthru
        _
      // Predicated region
      $region21: #{gcn_forward.2} parent=11 // pred_check
        %p194 = pneg %p135
      $region22: #{gcn_forward.2} parent=11 // pred_check_branch
        %196 = sbr.rel (%p194) target = $region24
      $region23: #{gcn_forward.2} parent=11 // pred_region
        %p197 = scmp.lt.s32.totalorder %s21, 0
        %s198 = scalar_select %p197, %s21, 0
        %s199 = scalar_lea.vmem %s3, %s198
      $region24: #{gcn_forward.2} parent=11 // pred_fallthru
        _
    $region12: #{gcn_forward.2} parent=5 // pred_fallthru
      _
    %p200 = scmp.lt.s32.totalorder %s10, 2
    // Predicated region
    $region25: #{gcn_forward.2} parent=5 // pred_check
      %p201 = pneg %p200
    $region26: #{gcn_forward.2} parent=5 // pred_check_branch
      %203 = sbr.rel (%p201) target = $region28
    $region27: #{gcn_forward.2} parent=5 // pred_region
      // Predicated region
      $region29: #{gcn_forward.2} parent=27 // pred_check
        %p204 = pneg %p51
      $region30: #{gcn_forward.2} parent=27 // pred_check_branch
        %206 = sbr.rel (%p204) target = $region32
      $region31: #{gcn_forward.2} parent=27 // pred_region
        %s207 = smul.u32 16, %s17
        %s208 = smul.u32 2, %s19
        %p209 = scmp.lt.s32.totalorder %s207, 31
        %s210 = scalar_select %p209, %s207, 31
        %p211 = scmp.lt.s32.totalorder %s208, 1
        %s212 = scalar_select %p211, %s208, 1
        %s213 = smul.addr %s210, 2
        %s214 = sadd.s32 %s212, %s213
        %s215 = smul.addr %s214, 8
        %s216 = scalar_lea.vmem %s0, %s215
        %s217 = smul.u32 16, %s17
        %s218 = smul.u32 2, %s19
      $region32: #{gcn_forward.2} parent=27 // pred_fallthru
        _
    $region28: #{gcn_forward.2} parent=5 // pred_fallthru
      _
    %p219 = scmp.le.s32.totalorder 1, %s10
    %p220 = scmp.lt.s32.totalorder %s10, 3
    %p221 = pnand %p219, %p220
    %p222 = pneg %p221
    // Predicated region
    $region33: #{gcn_forward.2} parent=5 // pred_check
      _
    $region34: #{gcn_forward.2} parent=5 // pred_check_branch
      %224 = sbr.rel (%p221) target = $region36
    $region35: #{gcn_forward.2} parent=5 // pred_region
      %s225 = ssub.s32 %s10, 1
      %s226 = smul.u32 16, %s20
      %s227 = smul.u32 2, %s22
      %p228 = scmp.lt.s32.totalorder %s226, 31
      %s229 = scalar_select %p228, %s226, 31
      %p230 = scmp.lt.s32.totalorder %s227, 1
      %s231 = scalar_select %p230, %s227, 1
      %s232 = smul.addr %s229, 2
      %s233 = sadd.s32 %s231, %s232
      %s234 = smul.addr %s233, 8
      %s235 = scalar_lea.vmem %s0, %s234
      %p236 = pneg %p57
      %p237 = pneg %p54
      %s238 = smul.u32 32, %s22
      %p239 = scmp.lt.s32.totalorder %s238, 31
      %s240 = scalar_select %p239, %s238, 31
      %s241 = smul.addr %s240, 8
      %s242 = scalar_lea.vmem %s1, %s241
      %p243 = pneg %p83
      %p244 = pneg %p80
      %p245 = scmp.lt.s32.totalorder %s21, 0
      %s246 = scalar_select %p245, %s21, 0
      %s247 = smul.addr %s246, 8
      %s248 = scalar_lea.vmem %s2, %s247
      %p249 = pneg %p109
      %p250 = pneg %p106
      %p251 = scmp.lt.s32.totalorder %s21, 0
      %s252 = scalar_select %p251, %s21, 0
      %s253 = scalar_lea.vmem %s3, %s252
      %p254 = pneg %p135
      %p255 = pneg %p132
      %p256 = pneg %p163
      %p257 = pneg %p160
      %s258 = smul.u32 16, %s20
      %p259 = scmp.lt.s32.totalorder %s258, 31
      %s260 = scalar_select %p259, %s258, 31
      %p261 = scmp.lt.s32.totalorder %s21, 0
      %s262 = scalar_select %p261, %s21, 0
      %s263 = sadd.s32 %s262, %s260
      %s264 = smul.addr %s263, 8
      %s265 = scalar_lea.vmem %s4, %s264
      %s266 = smul.u32 16, %s20
      %s267 = smul.u32 2, %s22
      %p268 = scmp.lt.s32.totalorder %s266, 31
      %s269 = scalar_select %p268, %s266, 31
      %p270 = scmp.lt.s32.totalorder %s267, 1
      %s271 = scalar_select %p270, %s267, 1
      %s272 = smul.addr %s269, 2
      %s273 = sadd.s32 %s271, %s272
      %s274 = smul.addr %s273, 8
      %s275 = scalar_lea.vmem %s0, %s274
      %s276 = smul.u32 16, %s20
      %s277 = smul.u32 2, %s22
      %s278 = smul.u32 32, %s22
      %p279 = scmp.lt.s32.totalorder %s278, 31
      %s280 = scalar_select %p279, %s278, 31
      %s281 = smul.addr %s280, 8
      %s282 = scalar_lea.vmem %s1, %s281
      %s283 = smul.u32 32, %s22
      %p284 = scmp.lt.s32.totalorder %s21, 0
      %s285 = scalar_select %p284, %s21, 0
      %s286 = smul.addr %s285, 8
      %s287 = scalar_lea.vmem %s2, %s286
      %p288 = scmp.lt.s32.totalorder %s21, 0
      %s289 = scalar_select %p288, %s21, 0
      %s290 = scalar_lea.vmem %s3, %s289
      %s291 = smul.u32 16, %s20
      %p292 = scmp.lt.s32.totalorder %s291, 31
      %s293 = scalar_select %p292, %s291, 31
      %p294 = scmp.lt.s32.totalorder %s21, 0
      %s295 = scalar_select %p294, %s21, 0
      %s296 = sadd.s32 %s295, %s293
      %s297 = smul.addr %s296, 8
      %s298 = scalar_lea.vmem %s4, %s297
      %s299 = smul.u32 16, %s20
      %v300 = vld [vmem:[%s282] sm:$0xff]
      %v301 = vld [vmem:[%s282 + $0x8] sm:$0xff]
      %v302 = vld [vmem:[%s282 + $0x10] sm:$0xff]
      %v303 = vld [vmem:[%s282 + $0x18] sm:$0xff]
      %v304 = vld [vmem:[%s282 + $0x20] sm:$0xff]
      %v305 = vld [vmem:[%s282 + $0x28] sm:$0xff]
      %v306 = vld [vmem:[%s282 + $0x30] sm:$0xff]
      %v307 = vld [vmem:[%s282 + $0x38] sm:$0xff]
      %v308 = vld [vmem:[%s282 + $0x40] sm:$0xff]
      %v309 = vld [vmem:[%s282 + $0x48] sm:$0xff]
      %v310 = vld [vmem:[%s282 + $0x50] sm:$0xff]
      %v311 = vld [vmem:[%s282 + $0x58] sm:$0xff]
      %v312 = vld [vmem:[%s282 + $0x60] sm:$0xff]
      %v313 = vld [vmem:[%s282 + $0x68] sm:$0xff]
      %v314 = vld [vmem:[%s282 + $0x70] sm:$0xff]
      %v315 = vld [vmem:[%s282 + $0x78] sm:$0xff]
      %v316 = vld [vmem:[%s282 + $0x80] sm:$0xff]
      %v317 = vld [vmem:[%s282 + $0x88] sm:$0xff]
      %v318 = vld [vmem:[%s282 + $0x90] sm:$0xff]
      %v319 = vld [vmem:[%s282 + $0x98] sm:$0xff]
      %v320 = vld [vmem:[%s282 + $0xa0] sm:$0xff]
      %v321 = vld [vmem:[%s282 + $0xa8] sm:$0xff]
      %v322 = vld [vmem:[%s282 + $0xb0] sm:$0xff]
      %v323 = vld [vmem:[%s282 + $0xb8] sm:$0xff]
      %v324 = vld [vmem:[%s282 + $0xc0] sm:$0xff]
      %v325 = vld [vmem:[%s282 + $0xc8] sm:$0xff]
      %v326 = vld [vmem:[%s282 + $0xd0] sm:$0xff]
      %v327 = vld [vmem:[%s282 + $0xd8] sm:$0xff]
      %v328 = vld [vmem:[%s282 + $0xe0] sm:$0xff]
      %v329 = vld [vmem:[%s282 + $0xe8] sm:$0xff]
      %v330 = vld [vmem:[%s282 + $0xf0] sm:$0xff]
      %v331 = vld [vmem:[%s282 + $0xf8] sm:$0xff]
      %v332 = vld [vmem:[%s287] sm:$0xff]
      %v333 = vld [vmem:[%s287 + $0x8] sm:$0xff]
      %v334 = vld [vmem:[%s287 + $0x10] sm:$0xff]
      %v335 = vld [vmem:[%s287 + $0x18] sm:$0xff]
      %v336 = vld [vmem:[%s287 + $0x20] sm:$0xff]
      %v337 = vld [vmem:[%s287 + $0x28] sm:$0xff]
      %v338 = vld [vmem:[%s287 + $0x30] sm:$0xff]
      %v339 = vld [vmem:[%s287 + $0x38] sm:$0xff]
      %v340 = vld [vmem:[%s287 + $0x40] sm:$0xff]
      %v341 = vld [vmem:[%s287 + $0x48] sm:$0xff]
      %v342 = vld [vmem:[%s287 + $0x50] sm:$0xff]
      %v343 = vld [vmem:[%s287 + $0x58] sm:$0xff]
      %v344 = vld [vmem:[%s287 + $0x60] sm:$0xff]
      %v345 = vld [vmem:[%s287 + $0x68] sm:$0xff]
      %v346 = vld [vmem:[%s287 + $0x70] sm:$0xff]
      %v347 = vld [vmem:[%s287 + $0x78] sm:$0xff]
      %348 = vmatprep.subr.mxu0 0.0
      %349 = vmatpush1.msra.mxu0 %v347
      %350 = vmatprep.subr.mxu0 0.0
      %351 = vmatpush1.msra.mxu0 %v346
      %352 = vmatprep.subr.mxu0 0.0
      %353 = vmatpush1.msra.mxu0 %v345
      %354 = vmatprep.subr.mxu0 0.0
      %355 = vmatpush1.msra.mxu0 %v344
      %356 = vmatprep.subr.mxu0 0.0
      %357 = vmatpush1.msra.mxu0 %v343
      %358 = vmatprep.subr.mxu0 0.0
      %359 = vmatpush1.msra.mxu0 %v342
      %360 = vmatprep.subr.mxu0 0.0
      %361 = vmatpush1.msra.mxu0 %v341
      %362 = vmatprep.subr.mxu0 0.0
      %363 = vmatpush1.msra.mxu0 %v340
      %364 = vmatprep.subr.mxu0 0.0
      %365 = vmatpush1.msra.mxu0 %v339
      %366 = vmatprep.subr.mxu0 0.0
      %367 = vmatpush1.msra.mxu0 %v338
      %368 = vmatprep.subr.mxu0 0.0
      %369 = vmatpush1.msra.mxu0 %v337
      %370 = vmatprep.subr.mxu0 0.0
      %371 = vmatpush1.msra.mxu0 %v336
      %372 = vmatprep.subr.mxu0 0.0
      %373 = vmatpush1.msra.mxu0 %v335
      %374 = vmatprep.subr.mxu0 0.0
      %375 = vmatpush1.msra.mxu0 %v334
      %376 = vmatprep.subr.mxu0 0.0
      %377 = vmatpush1.msra.mxu0 %v333
      %378 = vmatprep.subr.mxu0 0.0
      %379 = vmatpush1.msra.mxu0 %v332
      %380 = vmatprep.subr.mxu0 0.0
      %381 = vmatpush2.msra.mxu0 0.0
      %382 = vmatprep.subr.mxu0 0.0
      %383 = vmatpush2.msra.mxu0 0.0
      %384 = vmatprep.subr.mxu0 0.0
      %385 = vmatpush2.msra.mxu0 0.0
      %386 = vmatprep.subr.mxu0 0.0
      %387 = vmatpush2.msra.mxu0 0.0
      %388 = vmatprep.subr.mxu0 0.0
      %389 = vmatpush2.msra.mxu0 0.0
      %390 = vmatprep.subr.mxu0 0.0
      %391 = vmatpush2.msra.mxu0 0.0
      %392 = vmatprep.subr.mxu0 0.0
      %393 = vmatpush2.msra.mxu0 0.0
      %394 = vmatprep.subr.mxu0 0.0
      %395 = vmatpush2.msra.mxu0 0.0
      %396 = vmatprep.subr.mxu0 0.0
      %397 = vmatpush2.msra.mxu0 0.0
      %398 = vmatprep.subr.mxu0 0.0
      %399 = vmatpush2.msra.mxu0 0.0
      %400 = vmatprep.subr.mxu0 0.0
      %401 = vmatpush2.msra.mxu0 0.0
      %402 = vmatprep.subr.mxu0 0.0
      %403 = vmatpush2.msra.mxu0 0.0
      %404 = vmatprep.subr.mxu0 0.0
      %405 = vmatpush2.msra.mxu0 0.0
      %406 = vmatprep.subr.mxu0 0.0
      %407 = vmatpush2.msra.mxu0 0.0
      %408 = vmatprep.subr.mxu0 0.0
      %409 = vmatpush2.msra.mxu0 0.0
      %410 = vmatprep.subr.mxu0 0.0
      %411 = vmatpush2.msra.mxu0 0.0
      %412 = vmatprep.mubr.f32.mxu0 0.0
      %413 = vmatmul.mubr.f32.gmra.mxu0 %v300
      %v414 = vpop.f32.mrf.mxu0
      %v415 = vadd.f32 0.0, %v414
      %v416 = vpop.f32.mrf.mxu0
      %417 = vmatprep.mubr.f32.mxu0 0.0
      %418 = vmatmul.mubr.f32.gmra.mxu0 %v301
      %v419 = vpop.f32.mrf.mxu0
      %v420 = vadd.f32 0.0, %v419
      %v421 = vpop.f32.mrf.mxu0
      %422 = vmatprep.mubr.f32.mxu0 0.0
      %423 = vmatmul.mubr.f32.gmra.mxu0 %v302
      %v424 = vpop.f32.mrf.mxu0
      %v425 = vadd.f32 0.0, %v424
      %v426 = vpop.f32.mrf.mxu0
      %427 = vmatprep.mubr.f32.mxu0 0.0
      %428 = vmatmul.mubr.f32.gmra.mxu0 %v303
      %v429 = vpop.f32.mrf.mxu0
      %v430 = vadd.f32 0.0, %v429
      %v431 = vpop.f32.mrf.mxu0
      %432 = vmatprep.mubr.f32.mxu0 0.0
      %433 = vmatmul.mubr.f32.gmra.mxu0 %v304
      %v434 = vpop.f32.mrf.mxu0
      %v435 = vadd.f32 0.0, %v434
      %v436 = vpop.f32.mrf.mxu0
      %437 = vmatprep.mubr.f32.mxu0 0.0
      %438 = vmatmul.mubr.f32.gmra.mxu0 %v305
      %v439 = vpop.f32.mrf.mxu0
      %v440 = vadd.f32 0.0, %v439
      %v441 = vpop.f32.mrf.mxu0
      %442 = vmatprep.mubr.f32.mxu0 0.0
      %443 = vmatmul.mubr.f32.gmra.mxu0 %v306
      %v444 = vpop.f32.mrf.mxu0
      %v445 = vadd.f32 0.0, %v444
      %v446 = vpop.f32.mrf.mxu0
      %447 = vmatprep.mubr.f32.mxu0 0.0
      %448 = vmatmul.mubr.f32.gmra.mxu0 %v307
      %v449 = vpop.f32.mrf.mxu0
      %v450 = vadd.f32 0.0, %v449
      %v451 = vpop.f32.mrf.mxu0
      %452 = vmatprep.mubr.f32.mxu0 0.0
      %453 = vmatmul.mubr.f32.gmra.mxu0 %v308
      %v454 = vpop.f32.mrf.mxu0
      %v455 = vadd.f32 0.0, %v454
      %v456 = vpop.f32.mrf.mxu0
      %457 = vmatprep.mubr.f32.mxu0 0.0
      %458 = vmatmul.mubr.f32.gmra.mxu0 %v309
      %v459 = vpop.f32.mrf.mxu0
      %v460 = vadd.f32 0.0, %v459
      %v461 = vpop.f32.mrf.mxu0
      %462 = vmatprep.mubr.f32.mxu0 0.0
      %463 = vmatmul.mubr.f32.gmra.mxu0 %v310
      %v464 = vpop.f32.mrf.mxu0
      %v465 = vadd.f32 0.0, %v464
      %v466 = vpop.f32.mrf.mxu0
      %467 = vmatprep.mubr.f32.mxu0 0.0
      %468 = vmatmul.mubr.f32.gmra.mxu0 %v311
      %v469 = vpop.f32.mrf.mxu0
      %v470 = vadd.f32 0.0, %v469
      %v471 = vpop.f32.mrf.mxu0
      %472 = vmatprep.mubr.f32.mxu0 0.0
      %473 = vmatmul.mubr.f32.gmra.mxu0 %v312
      %v474 = vpop.f32.mrf.mxu0
      %v475 = vadd.f32 0.0, %v474
      %v476 = vpop.f32.mrf.mxu0
      %477 = vmatprep.mubr.f32.mxu0 0.0
      %478 = vmatmul.mubr.f32.gmra.mxu0 %v313
      %v479 = vpop.f32.mrf.mxu0
      %v480 = vadd.f32 0.0, %v479
      %v481 = vpop.f32.mrf.mxu0
      %482 = vmatprep.mubr.f32.mxu0 0.0
      %483 = vmatmul.mubr.f32.gmra.mxu0 %v314
      %v484 = vpop.f32.mrf.mxu0
      %v485 = vadd.f32 0.0, %v484
      %v486 = vpop.f32.mrf.mxu0
      %487 = vmatprep.mubr.f32.mxu0 0.0
      %488 = vmatmul.mubr.f32.gmra.mxu0 %v315
      %v489 = vpop.f32.mrf.mxu0
      %v490 = vadd.f32 0.0, %v489
      %v491 = vpop.f32.mrf.mxu0
      %492 = vmatprep.mubr.f32.mxu0 0.0
      %493 = vmatmul.mubr.f32.gmra.mxu0 %v316
      %v494 = vpop.f32.mrf.mxu0
      %v495 = vadd.f32 0.0, %v494
      %v496 = vpop.f32.mrf.mxu0
      %497 = vmatprep.mubr.f32.mxu0 0.0
      %498 = vmatmul.mubr.f32.gmra.mxu0 %v317
      %v499 = vpop.f32.mrf.mxu0
      %v500 = vadd.f32 0.0, %v499
      %v501 = vpop.f32.mrf.mxu0
      %502 = vmatprep.mubr.f32.mxu0 0.0
      %503 = vmatmul.mubr.f32.gmra.mxu0 %v318
      %v504 = vpop.f32.mrf.mxu0
      %v505 = vadd.f32 0.0, %v504
      %v506 = vpop.f32.mrf.mxu0
      %507 = vmatprep.mubr.f32.mxu0 0.0
      %508 = vmatmul.mubr.f32.gmra.mxu0 %v319
      %v509 = vpop.f32.mrf.mxu0
      %v510 = vadd.f32 0.0, %v509
      %v511 = vpop.f32.mrf.mxu0
      %512 = vmatprep.mubr.f32.mxu0 0.0
      %513 = vmatmul.mubr.f32.gmra.mxu0 %v320
      %v514 = vpop.f32.mrf.mxu0
      %v515 = vadd.f32 0.0, %v514
      %v516 = vpop.f32.mrf.mxu0
      %517 = vmatprep.mubr.f32.mxu0 0.0
      %518 = vmatmul.mubr.f32.gmra.mxu0 %v321
      %v519 = vpop.f32.mrf.mxu0
      %v520 = vadd.f32 0.0, %v519
      %v521 = vpop.f32.mrf.mxu0
      %522 = vmatprep.mubr.f32.mxu0 0.0
      %523 = vmatmul.mubr.f32.gmra.mxu0 %v322
      %v524 = vpop.f32.mrf.mxu0
      %v525 = vadd.f32 0.0, %v524
      %v526 = vpop.f32.mrf.mxu0
      %527 = vmatprep.mubr.f32.mxu0 0.0
      %528 = vmatmul.mubr.f32.gmra.mxu0 %v323
      %v529 = vpop.f32.mrf.mxu0
      %v530 = vadd.f32 0.0, %v529
      %v531 = vpop.f32.mrf.mxu0
      %532 = vmatprep.mubr.f32.mxu0 0.0
      %533 = vmatmul.mubr.f32.gmra.mxu0 %v324
      %v534 = vpop.f32.mrf.mxu0
      %v535 = vadd.f32 0.0, %v534
      %v536 = vpop.f32.mrf.mxu0
      %537 = vmatprep.mubr.f32.mxu0 0.0
      %538 = vmatmul.mubr.f32.gmra.mxu0 %v325
      %v539 = vpop.f32.mrf.mxu0
      %v540 = vadd.f32 0.0, %v539
      %v541 = vpop.f32.mrf.mxu0
      %542 = vmatprep.mubr.f32.mxu0 0.0
      %543 = vmatmul.mubr.f32.gmra.mxu0 %v326
      %v544 = vpop.f32.mrf.mxu0
      %v545 = vadd.f32 0.0, %v544
      %v546 = vpop.f32.mrf.mxu0
      %547 = vmatprep.mubr.f32.mxu0 0.0
      %548 = vmatmul.mubr.f32.gmra.mxu0 %v327
      %v549 = vpop.f32.mrf.mxu0
      %v550 = vadd.f32 0.0, %v549
      %v551 = vpop.f32.mrf.mxu0
      %552 = vmatprep.mubr.f32.mxu0 0.0
      %553 = vmatmul.mubr.f32.gmra.mxu0 %v328
      %v554 = vpop.f32.mrf.mxu0
      %v555 = vadd.f32 0.0, %v554
      %v556 = vpop.f32.mrf.mxu0
      %557 = vmatprep.mubr.f32.mxu0 0.0
      %558 = vmatmul.mubr.f32.gmra.mxu0 %v329
      %v559 = vpop.f32.mrf.mxu0
      %v560 = vadd.f32 0.0, %v559
      %v561 = vpop.f32.mrf.mxu0
      %562 = vmatprep.mubr.f32.mxu0 0.0
      %563 = vmatmul.mubr.f32.gmra.mxu0 %v330
      %v564 = vpop.f32.mrf.mxu0
      %v565 = vadd.f32 0.0, %v564
      %v566 = vpop.f32.mrf.mxu0
      %567 = vmatprep.mubr.f32.mxu0 0.0
      %568 = vmatmul.mubr.f32.gmra.mxu0 %v331
      %v569 = vpop.f32.mrf.mxu0
      %v570 = vadd.f32 0.0, %v569
      %v571 = vpop.f32.mrf.mxu0
      %572 = vdwg.mxu0
      %v573 = vld [vmem:[%s275] sm:$0xff]
      %v574 = vld [vmem:[%s275 + $0x8] sm:$0xff]
      %v575 = vld [vmem:[%s275 + $0x10] sm:$0xff]
      %v576 = vld [vmem:[%s275 + $0x18] sm:$0xff]
      %v577 = vld [vmem:[%s275 + $0x20] sm:$0xff]
      %v578 = vld [vmem:[%s275 + $0x28] sm:$0xff]
      %v579 = vld [vmem:[%s275 + $0x30] sm:$0xff]
      %v580 = vld [vmem:[%s275 + $0x38] sm:$0xff]
      %v581 = vld [vmem:[%s275 + $0x40] sm:$0xff]
      %v582 = vld [vmem:[%s275 + $0x48] sm:$0xff]
      %v583 = vld [vmem:[%s275 + $0x50] sm:$0xff]
      %v584 = vld [vmem:[%s275 + $0x58] sm:$0xff]
      %v585 = vld [vmem:[%s275 + $0x60] sm:$0xff]
      %v586 = vld [vmem:[%s275 + $0x68] sm:$0xff]
      %v587 = vld [vmem:[%s275 + $0x70] sm:$0xff]
      %v588 = vld [vmem:[%s275 + $0x78] sm:$0xff]
      %v589 = vld [vmem:[%s275 + $0x80] sm:$0xff]
      %v590 = vld [vmem:[%s275 + $0x88] sm:$0xff]
      %v591 = vld [vmem:[%s275 + $0x90] sm:$0xff]
      %v592 = vld [vmem:[%s275 + $0x98] sm:$0xff]
      %v593 = vld [vmem:[%s275 + $0xa0] sm:$0xff]
      %v594 = vld [vmem:[%s275 + $0xa8] sm:$0xff]
      %v595 = vld [vmem:[%s275 + $0xb0] sm:$0xff]
      %v596 = vld [vmem:[%s275 + $0xb8] sm:$0xff]
      %v597 = vld [vmem:[%s275 + $0xc0] sm:$0xff]
      %v598 = vld [vmem:[%s275 + $0xc8] sm:$0xff]
      %v599 = vld [vmem:[%s275 + $0xd0] sm:$0xff]
      %v600 = vld [vmem:[%s275 + $0xd8] sm:$0xff]
      %v601 = vld [vmem:[%s275 + $0xe0] sm:$0xff]
      %v602 = vld [vmem:[%s275 + $0xe8] sm:$0xff]
      %v603 = vld [vmem:[%s275 + $0xf0] sm:$0xff]
      %v604 = vld [vmem:[%s275 + $0xf8] sm:$0xff]
      %605 = vmatprep.subr.mxu0 0.0
      %606 = vmatpush1.msra.mxu0 %v490
      %607 = vmatprep.subr.mxu0 0.0
      %608 = vmatpush1.msra.mxu0 %v485
      %609 = vmatprep.subr.mxu0 0.0
      %610 = vmatpush1.msra.mxu0 %v480
      %611 = vmatprep.subr.mxu0 0.0
      %612 = vmatpush1.msra.mxu0 %v475
      %613 = vmatprep.subr.mxu0 0.0
      %614 = vmatpush1.msra.mxu0 %v470
      %615 = vmatprep.subr.mxu0 0.0
      %616 = vmatpush1.msra.mxu0 %v465
      %617 = vmatprep.subr.mxu0 0.0
      %618 = vmatpush1.msra.mxu0 %v460
      %619 = vmatprep.subr.mxu0 0.0
      %620 = vmatpush1.msra.mxu0 %v455
      %621 = vmatprep.subr.mxu0 0.0
      %622 = vmatpush1.msra.mxu0 %v450
      %623 = vmatprep.subr.mxu0 0.0
      %624 = vmatpush1.msra.mxu0 %v445
      %625 = vmatprep.subr.mxu0 0.0
      %626 = vmatpush1.msra.mxu0 %v440
      %627 = vmatprep.subr.mxu0 0.0
      %628 = vmatpush1.msra.mxu0 %v435
      %629 = vmatprep.subr.mxu0 0.0
      %630 = vmatpush1.msra.mxu0 %v430
      %631 = vmatprep.subr.mxu0 0.0
      %632 = vmatpush1.msra.mxu0 %v425
      %633 = vmatprep.subr.mxu0 0.0
      %634 = vmatpush1.msra.mxu0 %v420
      %635 = vmatprep.subr.mxu0 0.0
      %636 = vmatpush1.msra.mxu0 %v415
      %637 = vmatprep.subr.mxu0 0.0
      %638 = vmatpush2.msra.mxu0 %v570
      %639 = vmatprep.subr.mxu0 0.0
      %640 = vmatpush2.msra.mxu0 %v565
      %641 = vmatprep.subr.mxu0 0.0
      %642 = vmatpush2.msra.mxu0 %v560
      %643 = vmatprep.subr.mxu0 0.0
      %644 = vmatpush2.msra.mxu0 %v555
      %645 = vmatprep.subr.mxu0 0.0
      %646 = vmatpush2.msra.mxu0 %v550
      %647 = vmatprep.subr.mxu0 0.0
      %648 = vmatpush2.msra.mxu0 %v545
      %649 = vmatprep.subr.mxu0 0.0
      %650 = vmatpush2.msra.mxu0 %v540
      %651 = vmatprep.subr.mxu0 0.0
      %652 = vmatpush2.msra.mxu0 %v535
      %653 = vmatprep.subr.mxu0 0.0
      %654 = vmatpush2.msra.mxu0 %v530
      %655 = vmatprep.subr.mxu0 0.0
      %656 = vmatpush2.msra.mxu0 %v525
      %657 = vmatprep.subr.mxu0 0.0
      %658 = vmatpush2.msra.mxu0 %v520
      %659 = vmatprep.subr.mxu0 0.0
      %660 = vmatpush2.msra.mxu0 %v515
      %661 = vmatprep.subr.mxu0 0.0
      %662 = vmatpush2.msra.mxu0 %v510
      %663 = vmatprep.subr.mxu0 0.0
      %664 = vmatpush2.msra.mxu0 %v505
      %665 = vmatprep.subr.mxu0 0.0
      %666 = vmatpush2.msra.mxu0 %v500
      %667 = vmatprep.subr.mxu0 0.0
      %668 = vmatpush2.msra.mxu0 %v495
      %669 = vmatprep.mubr.f32.mxu0 %v574
      %670 = vmatmul.mubr.f32.gmra.mxu0 %v573
      %v671 = vpop.f32.mrf.mxu0
      %v672 = vadd.f32 0.0, %v671
      %v673 = vpop.f32.mrf.mxu0
      %674 = vmatprep.mubr.f32.mxu0 %v576
      %675 = vmatmul.mubr.f32.gmra.mxu0 %v575
      %v676 = vpop.f32.mrf.mxu0
      %v677 = vadd.f32 0.0, %v676
      %v678 = vpop.f32.mrf.mxu0
      %679 = vmatprep.mubr.f32.mxu0 %v578
      %680 = vmatmul.mubr.f32.gmra.mxu0 %v577
      %v681 = vpop.f32.mrf.mxu0
      %v682 = vadd.f32 0.0, %v681
      %v683 = vpop.f32.mrf.mxu0
      %684 = vmatprep.mubr.f32.mxu0 %v580
      %685 = vmatmul.mubr.f32.gmra.mxu0 %v579
      %v686 = vpop.f32.mrf.mxu0
      %v687 = vadd.f32 0.0, %v686
      %v688 = vpop.f32.mrf.mxu0
      %689 = vmatprep.mubr.f32.mxu0 %v582
      %690 = vmatmul.mubr.f32.gmra.mxu0 %v581
      %v691 = vpop.f32.mrf.mxu0
      %v692 = vadd.f32 0.0, %v691
      %v693 = vpop.f32.mrf.mxu0
      %694 = vmatprep.mubr.f32.mxu0 %v584
      %695 = vmatmul.mubr.f32.gmra.mxu0 %v583
      %v696 = vpop.f32.mrf.mxu0
      %v697 = vadd.f32 0.0, %v696
      %v698 = vpop.f32.mrf.mxu0
      %699 = vmatprep.mubr.f32.mxu0 %v586
      %700 = vmatmul.mubr.f32.gmra.mxu0 %v585
      %v701 = vpop.f32.mrf.mxu0
      %v702 = vadd.f32 0.0, %v701
      %v703 = vpop.f32.mrf.mxu0
      %704 = vmatprep.mubr.f32.mxu0 %v588
      %705 = vmatmul.mubr.f32.gmra.mxu0 %v587
      %v706 = vpop.f32.mrf.mxu0
      %v707 = vadd.f32 0.0, %v706
      %v708 = vpop.f32.mrf.mxu0
      %709 = vmatprep.mubr.f32.mxu0 %v590
      %710 = vmatmul.mubr.f32.gmra.mxu0 %v589
      %v711 = vpop.f32.mrf.mxu0
      %v712 = vadd.f32 0.0, %v711
      %v713 = vpop.f32.mrf.mxu0
      %714 = vmatprep.mubr.f32.mxu0 %v592
      %715 = vmatmul.mubr.f32.gmra.mxu0 %v591
      %v716 = vpop.f32.mrf.mxu0
      %v717 = vadd.f32 0.0, %v716
      %v718 = vpop.f32.mrf.mxu0
      %719 = vmatprep.mubr.f32.mxu0 %v594
      %720 = vmatmul.mubr.f32.gmra.mxu0 %v593
      %v721 = vpop.f32.mrf.mxu0
      %v722 = vadd.f32 0.0, %v721
      %v723 = vpop.f32.mrf.mxu0
      %724 = vmatprep.mubr.f32.mxu0 %v596
      %725 = vmatmul.mubr.f32.gmra.mxu0 %v595
      %v726 = vpop.f32.mrf.mxu0
      %v727 = vadd.f32 0.0, %v726
      %v728 = vpop.f32.mrf.mxu0
      %729 = vmatprep.mubr.f32.mxu0 %v598
      %730 = vmatmul.mubr.f32.gmra.mxu0 %v597
      %v731 = vpop.f32.mrf.mxu0
      %v732 = vadd.f32 0.0, %v731
      %v733 = vpop.f32.mrf.mxu0
      %734 = vmatprep.mubr.f32.mxu0 %v600
      %735 = vmatmul.mubr.f32.gmra.mxu0 %v599
      %v736 = vpop.f32.mrf.mxu0
      %v737 = vadd.f32 0.0, %v736
      %v738 = vpop.f32.mrf.mxu0
      %739 = vmatprep.mubr.f32.mxu0 %v602
      %740 = vmatmul.mubr.f32.gmra.mxu0 %v601
      %v741 = vpop.f32.mrf.mxu0
      %v742 = vadd.f32 0.0, %v741
      %v743 = vpop.f32.mrf.mxu0
      %744 = vmatprep.mubr.f32.mxu0 %v604
      %745 = vmatmul.mubr.f32.gmra.mxu0 %v603
      %v746 = vpop.f32.mrf.mxu0
      %v747 = vadd.f32 0.0, %v746
      %v748 = vpop.f32.mrf.mxu0
      %749 = vdwg.mxu0
      %p750 = scmp.eq.s32.totalorder %s22, 0
      // Predicated region
      $region37: #{gcn_forward.2} parent=35 // pred_check
        %p751 = pneg %p750
      $region38: #{gcn_forward.2} parent=35 // pred_check_branch
        %753 = sbr.rel (%p751) target = $region40
      $region39: #{gcn_forward.2} parent=35 // pred_region
        %754 = vst [vmem:[#allocation2] sm:$0xff] %v672
        %755 = vst [vmem:[#allocation2 + $0x8] sm:$0xff] %v677
        %756 = vst [vmem:[#allocation2 + $0x10] sm:$0xff] %v682
        %757 = vst [vmem:[#allocation2 + $0x18] sm:$0xff] %v687
        %758 = vst [vmem:[#allocation2 + $0x20] sm:$0xff] %v692
        %759 = vst [vmem:[#allocation2 + $0x28] sm:$0xff] %v697
        %760 = vst [vmem:[#allocation2 + $0x30] sm:$0xff] %v702
        %761 = vst [vmem:[#allocation2 + $0x38] sm:$0xff] %v707
        %762 = vst [vmem:[#allocation2 + $0x40] sm:$0xff] %v712
        %763 = vst [vmem:[#allocation2 + $0x48] sm:$0xff] %v717
        %764 = vst [vmem:[#allocation2 + $0x50] sm:$0xff] %v722
        %765 = vst [vmem:[#allocation2 + $0x58] sm:$0xff] %v727
        %766 = vst [vmem:[#allocation2 + $0x60] sm:$0xff] %v732
        %767 = vst [vmem:[#allocation2 + $0x68] sm:$0xff] %v737
        %768 = vst [vmem:[#allocation2 + $0x70] sm:$0xff] %v742
        %769 = vst [vmem:[#allocation2 + $0x78] sm:$0xff] %v747
      $region40: #{gcn_forward.2} parent=35 // pred_fallthru
        _
      %p770 = scmp.gt.s32.totalorder %s22, 0
      // Predicated region
      $region41: #{gcn_forward.2} parent=35 // pred_check
        %p771 = pneg %p770
      $region42: #{gcn_forward.2} parent=35 // pred_check_branch
        %773 = sbr.rel (%p771) target = $region44
      $region43: #{gcn_forward.2} parent=35 // pred_region
        %v774 = vld [vmem:[#allocation2] sm:$0xff]
        %v775 = vld [vmem:[#allocation2 + $0x8] sm:$0xff]
        %v776 = vld [vmem:[#allocation2 + $0x10] sm:$0xff]
        %v777 = vld [vmem:[#allocation2 + $0x18] sm:$0xff]
        %v778 = vld [vmem:[#allocation2 + $0x20] sm:$0xff]
        %v779 = vld [vmem:[#allocation2 + $0x28] sm:$0xff]
        %v780 = vld [vmem:[#allocation2 + $0x30] sm:$0xff]
        %v781 = vld [vmem:[#allocation2 + $0x38] sm:$0xff]
        %v782 = vld [vmem:[#allocation2 + $0x40] sm:$0xff]
        %v783 = vld [vmem:[#allocation2 + $0x48] sm:$0xff]
        %v784 = vld [vmem:[#allocation2 + $0x50] sm:$0xff]
        %v785 = vld [vmem:[#allocation2 + $0x58] sm:$0xff]
        %v786 = vld [vmem:[#allocation2 + $0x60] sm:$0xff]
        %v787 = vld [vmem:[#allocation2 + $0x68] sm:$0xff]
        %v788 = vld [vmem:[#allocation2 + $0x70] sm:$0xff]
        %v789 = vld [vmem:[#allocation2 + $0x78] sm:$0xff]
        %v790 = vadd.f32 %v774, %v672
        %v791 = vadd.f32 %v775, %v677
        %v792 = vadd.f32 %v776, %v682
        %v793 = vadd.f32 %v777, %v687
        %v794 = vadd.f32 %v778, %v692
        %v795 = vadd.f32 %v779, %v697
        %v796 = vadd.f32 %v780, %v702
        %v797 = vadd.f32 %v781, %v707
        %v798 = vadd.f32 %v782, %v712
        %v799 = vadd.f32 %v783, %v717
        %v800 = vadd.f32 %v784, %v722
        %v801 = vadd.f32 %v785, %v727
        %v802 = vadd.f32 %v786, %v732
        %v803 = vadd.f32 %v787, %v737
        %v804 = vadd.f32 %v788, %v742
        %v805 = vadd.f32 %v789, %v747
        %806 = vst [vmem:[#allocation2] sm:$0xff] %v790
        %807 = vst [vmem:[#allocation2 + $0x8] sm:$0xff] %v791
        %808 = vst [vmem:[#allocation2 + $0x10] sm:$0xff] %v792
        %809 = vst [vmem:[#allocation2 + $0x18] sm:$0xff] %v793
        %810 = vst [vmem:[#allocation2 + $0x20] sm:$0xff] %v794
        %811 = vst [vmem:[#allocation2 + $0x28] sm:$0xff] %v795
        %812 = vst [vmem:[#allocation2 + $0x30] sm:$0xff] %v796
        %813 = vst [vmem:[#allocation2 + $0x38] sm:$0xff] %v797
        %814 = vst [vmem:[#allocation2 + $0x40] sm:$0xff] %v798
        %815 = vst [vmem:[#allocation2 + $0x48] sm:$0xff] %v799
        %816 = vst [vmem:[#allocation2 + $0x50] sm:$0xff] %v800
        %817 = vst [vmem:[#allocation2 + $0x58] sm:$0xff] %v801
        %818 = vst [vmem:[#allocation2 + $0x60] sm:$0xff] %v802
        %819 = vst [vmem:[#allocation2 + $0x68] sm:$0xff] %v803
        %820 = vst [vmem:[#allocation2 + $0x70] sm:$0xff] %v804
        %821 = vst [vmem:[#allocation2 + $0x78] sm:$0xff] %v805
      $region44: #{gcn_forward.2} parent=35 // pred_fallthru
        _
      // Predicated region
      $region45: #{gcn_forward.2} parent=35 // pred_check
        %p822 = pneg %p750
      $region46: #{gcn_forward.2} parent=35 // pred_check_branch
        %824 = sbr.rel (%p822) target = $region48
      $region47: #{gcn_forward.2} parent=35 // pred_region
        %v825 = vld [vmem:[#allocation2] sm:$0xff]
        %v826 = vld [vmem:[#allocation2 + $0x8] sm:$0xff]
        %v827 = vld [vmem:[#allocation2 + $0x10] sm:$0xff]
        %v828 = vld [vmem:[#allocation2 + $0x18] sm:$0xff]
        %v829 = vld [vmem:[#allocation2 + $0x20] sm:$0xff]
        %v830 = vld [vmem:[#allocation2 + $0x28] sm:$0xff]
        %v831 = vld [vmem:[#allocation2 + $0x30] sm:$0xff]
        %v832 = vld [vmem:[#allocation2 + $0x38] sm:$0xff]
        %v833 = vld [vmem:[#allocation2 + $0x40] sm:$0xff]
        %v834 = vld [vmem:[#allocation2 + $0x48] sm:$0xff]
        %v835 = vld [vmem:[#allocation2 + $0x50] sm:$0xff]
        %v836 = vld [vmem:[#allocation2 + $0x58] sm:$0xff]
        %v837 = vld [vmem:[#allocation2 + $0x60] sm:$0xff]
        %v838 = vld [vmem:[#allocation2 + $0x68] sm:$0xff]
        %v839 = vld [vmem:[#allocation2 + $0x70] sm:$0xff]
        %v840 = vld [vmem:[#allocation2 + $0x78] sm:$0xff]
        %v841 = vld [vmem:[%s290] sm:$0x1]
        %v843 = vlaneseq
        %v844 = vshrl.u32 %v843, 7
        %v845 = vsub.s32 0, %v844
        %v846 = vrot.slane %v841, %v845
        %v848 = vadd.f32 %v825, %v846
        %v849 = vadd.f32 %v826, %v846
        %v850 = vadd.f32 %v827, %v846
        %v851 = vadd.f32 %v828, %v846
        %v852 = vadd.f32 %v829, %v846
        %v853 = vadd.f32 %v830, %v846
        %v854 = vadd.f32 %v831, %v846
        %v855 = vadd.f32 %v832, %v846
        %v856 = vadd.f32 %v833, %v846
        %v857 = vadd.f32 %v834, %v846
        %v858 = vadd.f32 %v835, %v846
        %v859 = vadd.f32 %v836, %v846
        %v860 = vadd.f32 %v837, %v846
        %v861 = vadd.f32 %v838, %v846
        %v862 = vadd.f32 %v839, %v846
        %v863 = vadd.f32 %v840, %v846
        %v864 = vmax.f32 %v848, 0.0
        %v865 = vmax.f32 %v849, 0.0
        %v866 = vmax.f32 %v850, 0.0
        %v867 = vmax.f32 %v851, 0.0
        %v868 = vmax.f32 %v852, 0.0
        %v869 = vmax.f32 %v853, 0.0
        %v870 = vmax.f32 %v854, 0.0
        %v871 = vmax.f32 %v855, 0.0
        %v872 = vmax.f32 %v856, 0.0
        %v873 = vmax.f32 %v857, 0.0
        %v874 = vmax.f32 %v858, 0.0
        %v875 = vmax.f32 %v859, 0.0
        %v876 = vmax.f32 %v860, 0.0
        %v877 = vmax.f32 %v861, 0.0
        %v878 = vmax.f32 %v862, 0.0
        %v879 = vmax.f32 %v863, 0.0
        %880 = vst [vmem:[%s298] sm:$0xff] %v864
        %881 = vst [vmem:[%s298 + $0x8] sm:$0xff] %v865
        %882 = vst [vmem:[%s298 + $0x10] sm:$0xff] %v866
        %883 = vst [vmem:[%s298 + $0x18] sm:$0xff] %v867
        %884 = vst [vmem:[%s298 + $0x20] sm:$0xff] %v868
        %885 = vst [vmem:[%s298 + $0x28] sm:$0xff] %v869
        %886 = vst [vmem:[%s298 + $0x30] sm:$0xff] %v870
        %887 = vst [vmem:[%s298 + $0x38] sm:$0xff] %v871
        %888 = vst [vmem:[%s298 + $0x40] sm:$0xff] %v872
        %889 = vst [vmem:[%s298 + $0x48] sm:$0xff] %v873
        %890 = vst [vmem:[%s298 + $0x50] sm:$0xff] %v874
        %891 = vst [vmem:[%s298 + $0x58] sm:$0xff] %v875
        %892 = vst [vmem:[%s298 + $0x60] sm:$0xff] %v876
        %893 = vst [vmem:[%s298 + $0x68] sm:$0xff] %v877
        %894 = vst [vmem:[%s298 + $0x70] sm:$0xff] %v878
        %895 = vst [vmem:[%s298 + $0x78] sm:$0xff] %v879
      $region48: #{gcn_forward.2} parent=35 // pred_fallthru
        _
      %s896 = smul.u32 16, %s20
      %p897 = scmp.lt.s32.totalorder %s896, 31
      %s898 = scalar_select %p897, %s896, 31
      %p899 = scmp.lt.s32.totalorder %s21, 0
      %s900 = scalar_select %p899, %s21, 0
      %s901 = sadd.s32 %s900, %s898
      %s902 = smul.addr %s901, 8
      %s903 = scalar_lea.vmem %s4, %s902
      // Predicated region
      $region49: #{gcn_forward.2} parent=35 // pred_check
        %p904 = pneg %p160
      $region50: #{gcn_forward.2} parent=35 // pred_check_branch
        %906 = sbr.rel (%p904) target = $region52
      $region51: #{gcn_forward.2} parent=35 // pred_region
        %s907 = smul.u32 16, %s20
      $region52: #{gcn_forward.2} parent=35 // pred_fallthru
        _
    $region36: #{gcn_forward.2} parent=5 // pred_fallthru
      _
    %p908 = scmp.le.s32.totalorder 2, %s10
    // Predicated region
    $region53: #{gcn_forward.2} parent=5 // pred_check
      %p909 = pneg %p908
    $region54: #{gcn_forward.2} parent=5 // pred_check_branch
      %911 = sbr.rel (%p909) target = $region56
    $region55: #{gcn_forward.2} parent=5 // pred_region
      %s912 = ssub.s32 %s10, 2
      // Predicated region
      $region57: #{gcn_forward.2} parent=55 // pred_check
        %p913 = pneg %p166
      $region58: #{gcn_forward.2} parent=55 // pred_check_branch
        %915 = sbr.rel (%p913) target = $region60
      $region59: #{gcn_forward.2} parent=55 // pred_region
        %s916 = smul.u32 16, %s23
        %p917 = scmp.lt.s32.totalorder %s916, 31
        %s918 = scalar_select %p917, %s916, 31
        %p919 = scmp.lt.s32.totalorder %s24, 0
        %s920 = scalar_select %p919, %s24, 0
        %s921 = sadd.s32 %s920, %s918
        %s922 = smul.addr %s921, 8
        %s923 = scalar_lea.vmem %s4, %s922
      $region60: #{gcn_forward.2} parent=55 // pred_fallthru
        _
    $region56: #{gcn_forward.2} parent=5 // pred_fallthru
      _
  $region6: #{gcn_forward.2} parent=0 // loop_footer
    %s14 = sadd.s32 1, %s10
  $region7: #{gcn_forward.2} parent=0 // loop_footer_branch
    %9 = sbr.rel target = $region3
  $region8: #{gcn_forward.2} parent=0 // loop_exit
    _

</llo_original>
